<compile_context>
chip_gen: v7x
topology: tpu7x:2x2x1
jax: 0.10.0
libtpu: 0.0.40
codegen_flags: <defaults>
</compile_context>

<pallas_src>
import functools
import math

import jax
import jax.numpy as jnp
from jax.experimental import pallas as pl
from jax.experimental.pallas import tpu as pltpu


# ---------------------------------------------------------------------------
# Fused kernel: all layers + FC head, everything resident in VMEM.
# ---------------------------------------------------------------------------
def _fused_lstm_kernel(*refs, T, B, H, n_layers):
    # refs = x, (wih_t, whh_t, b) * n_layers, wfc_t, out, hseq_scratch
    x_ref = refs[0]
    wrefs = refs[1:1 + 3 * n_layers]
    wfc_ref = refs[1 + 3 * n_layers]
    out_ref = refs[2 + 3 * n_layers]
    hseq_ref = refs[3 + 3 * n_layers]          # VMEM scratch (T*B, H)

    inp = x_ref[...].astype(jnp.float32)       # (T*B, D_in), row = t*B + b

    for layer in range(n_layers):
        wih_t = wrefs[3 * layer][...]          # (D_in, 4H)
        whh_t = wrefs[3 * layer + 1][...]      # (H, 4H)
        bias = wrefs[3 * layer + 2][...]       # (1, 4H)

        # Hoisted input projection (+ bias) for all timesteps at once — off the
        # serial recurrence path.
        xproj = jnp.dot(inp, wih_t, preferred_element_type=jnp.float32) + bias

        h = jnp.zeros((B, H), jnp.float32)
        c = jnp.zeros((B, H), jnp.float32)

        for t in range(T):                     # static, fully unrolled
            gates = xproj[t * B:(t + 1) * B, :] + jnp.dot(
                h, whh_t, preferred_element_type=jnp.float32)   # (B, 4H)

            # Full-width activations once, slice i/f/g/o afterwards.
            sig = jax.nn.sigmoid(gates)
            tan = jnp.tanh(gates)
            i_g = sig[:, 0 * H:1 * H]
            f_g = sig[:, 1 * H:2 * H]
            g_g = tan[:, 2 * H:3 * H]
            o_g = sig[:, 3 * H:4 * H]

            c = f_g * c + i_g * g_g
            h = o_g * jnp.tanh(c)

            hseq_ref[t * B:(t + 1) * B, :] = h   # sublane-aligned store (B=8)

        # Hidden sequence of this layer becomes next layer's input (read back
        # from VMEM scratch before it is overwritten on the next iteration).
        inp = hseq_ref[...]
        # dropout between layers is identity at inference time

    # FC head: one lane-dense matmul + single store.
    out = jnp.dot(inp, wfc_ref[...], preferred_element_type=jnp.float32)
    out_ref[...] = out.astype(out_ref.dtype)


# ---------------------------------------------------------------------------
# Wrapper: layout plumbing only (transpose / pad), one pallas_call.
# ---------------------------------------------------------------------------
def lstm_small_forward(x_btd, packed_params, hidden_dim, n_layers):
    """x_btd: (B, T, input_dim) batch-first (like nn.LSTM(batch_first=True)).

    Returns (B, T, 2)."""
    B, T, Din = x_btd.shape
    H = hidden_dim
    Bp = ((B + 7) // 8) * 8          # pad batch to a full sublane group (alignment only)

    # time-major + sublane padding, done once outside the kernel
    x_tbd = jnp.transpose(x_btd, (1, 0, 2))                        # (T, B, Din)
    x_pad = jnp.zeros((T, Bp, Din), x_btd.dtype).at[:, :B, :].set(x_tbd)
    x_flat = x_pad.reshape(T * Bp, Din)                            # row = t*Bp + b

    args = [x_flat]
    for (wih_t, whh_t, b) in packed_params["layers"]:
        args.extend([wih_t, whh_t, b])
    args.append(packed_params["fc_w_t"])

    out_flat = pl.pallas_call(
        functools.partial(_fused_lstm_kernel, T=T, B=Bp, H=H, n_layers=n_layers),
        out_shape=jax.ShapeDtypeStruct((T * Bp, 2), x_btd.dtype),
        scratch_shapes=[pltpu.VMEM((T * Bp, H), jnp.float32)],     # hidden sequence
    )(*args)

    out = out_flat.reshape(T, Bp, 2)[:, :B, :]                     # drop padding rows
    return jnp.transpose(out, (1, 0, 2))                           # (B, T, 2)


# ---------------------------------------------------------------------------
# Parameters: PyTorch-layout init + one-time packing into kernel layout.
# ---------------------------------------------------------------------------
def init_params(key, input_dim, hidden_dim, n_layers):
    """PyTorch-style uniform init, PyTorch weight layout."""
    k = 1.0 / math.sqrt(hidden_dim)
    layers = []
    for layer in range(n_layers):
        d_in = input_dim if layer == 0 else hidden_dim
        key, k1, k2, k3, k4 = jax.random.split(key, 5)
        w_ih = jax.random.uniform(k1, (4 * hidden_dim, d_in), jnp.float32, -k, k)
        w_hh = jax.random.uniform(k2, (4 * hidden_dim, hidden_dim), jnp.float32, -k, k)
        b_ih = jax.random.uniform(k3, (4 * hidden_dim,), jnp.float32, -k, k)
        b_hh = jax.random.uniform(k4, (4 * hidden_dim,), jnp.float32, -k, k)
        layers.append((w_ih, w_hh, b_ih, b_hh))
    key, kf = jax.random.split(key)
    fc_weight = jax.random.uniform(kf, (2, hidden_dim), jnp.float32, -k, k)
    return {"layers": layers, "fc_weight": fc_weight}


def pack_params(params):
    """One-time conversion: pre-transpose weights, pre-sum biases."""
    packed = []
    for (w_ih, w_hh, b_ih, b_hh) in params["layers"]:
        packed.append((
            jnp.transpose(w_ih),               # (D_in, 4H)
            jnp.transpose(w_hh),               # (H, 4H)
            (b_ih + b_hh).reshape(1, -1),      # (1, 4H)
        ))
    return {"layers": packed, "fc_w_t": jnp.transpose(params["fc_weight"])}  # (H, 2)


# ---------------------------------------------------------------------------
# Pure-JAX reference (mirrors PyTorch math) for a sanity check.
# ---------------------------------------------------------------------------
def lstm_small_reference(x_btd, params, hidden_dim, n_layers):
    B, T, _ = x_btd.shape
    H = hidden_dim
    hp = jax.lax.Precision.HIGHEST
    seq = x_btd
    for layer in range(n_layers):
        w_ih, w_hh, b_ih, b_hh = params["layers"][layer]
        h = jnp.zeros((B, H), jnp.float32)
        c = jnp.zeros((B, H), jnp.float32)
        outs = []
        for t in range(T):
            x_t = seq[:, t, :]
            gates = (jnp.dot(x_t, w_ih.T, precision=hp)
                     + jnp.dot(h, w_hh.T, precision=hp) + b_ih + b_hh)
            i_g = jax.nn.sigmoid(gates[:, 0 * H:1 * H])
            f_g = jax.nn.sigmoid(gates[:, 1 * H:2 * H])
            g_g = jnp.tanh(gates[:, 2 * H:3 * H])
            o_g = jax.nn.sigmoid(gates[:, 3 * H:4 * H])
            c = f_g * c + i_g * g_g
            h = o_g * jnp.tanh(c)
            outs.append(h)
        seq = jnp.stack(outs, axis=1)          # (B, T, H)
    return jnp.dot(seq, params["fc_weight"].T, precision=hp)


if __name__ == "__main__":
    # lstm_small(input_dim=8, hidden_dim=32, n_layers=2, do=0.1)
    INPUT_DIM = 8
    HIDDEN_DIM = 32
    N_LAYERS = 2
    BATCH = 2
    SEQ = 8

    key = jax.random.PRNGKey(0)
    key, kx = jax.random.split(key)
    x = jax.random.normal(kx, (BATCH, SEQ, INPUT_DIM), dtype=jnp.float32)
    params = init_params(key, INPUT_DIM, HIDDEN_DIM, N_LAYERS)
    packed = pack_params(params)               # one-time layout conversion

    fwd = jax.jit(functools.partial(lstm_small_forward,
                                    hidden_dim=HIDDEN_DIM, n_layers=N_LAYERS))
    out = jax.block_until_ready(fwd(x, packed))

    assert out.shape == (BATCH, SEQ, 2), out.shape
    assert bool(jnp.all(jnp.isfinite(out)))

    ref = lstm_small_reference(x, params, HIDDEN_DIM, N_LAYERS)
    max_err = float(jnp.max(jnp.abs(out - ref)))
    assert max_err < 1e-2, f"max abs err vs reference: {max_err}"

    print("KERNEL_OK")
</pallas_src>

<mosaic_0001>
module attributes {stable_mosaic.version = 11 : i64} {
  func.func @_fused_lstm_kernel(%arg0: memref<64x8xf32, #tpu.memory_space<vmem>>, %arg1: memref<8x128xf32, #tpu.memory_space<vmem>>, %arg2: memref<32x128xf32, #tpu.memory_space<vmem>>, %arg3: memref<1x128xf32, #tpu.memory_space<vmem>>, %arg4: memref<32x128xf32, #tpu.memory_space<vmem>>, %arg5: memref<32x128xf32, #tpu.memory_space<vmem>>, %arg6: memref<1x128xf32, #tpu.memory_space<vmem>>, %arg7: memref<32x2xf32, #tpu.memory_space<vmem>>, %arg8: memref<64x2xf32, #tpu.memory_space<vmem>>, %arg9: memref<64x32xf32, #tpu.memory_space<vmem>>) attributes {dimension_semantics = [], scalar_prefetch = 0 : i64, scratch_operands = 1 : i64, tpu.core_type = #tpu.core_type<tc>} {
    %c0 = arith.constant 0 : index
    %c0_0 = arith.constant 0 : index
    %0 = vector.load %arg0[%c0, %c0_0] : memref<64x8xf32, #tpu.memory_space<vmem>>, vector<64x8xf32>
    %c0_1 = arith.constant 0 : index
    %c0_2 = arith.constant 0 : index
    %1 = vector.load %arg1[%c0_1, %c0_2] : memref<8x128xf32, #tpu.memory_space<vmem>>, vector<8x128xf32>
    %c0_3 = arith.constant 0 : index
    %c0_4 = arith.constant 0 : index
    %2 = vector.load %arg2[%c0_3, %c0_4] : memref<32x128xf32, #tpu.memory_space<vmem>>, vector<32x128xf32>
    %c0_5 = arith.constant 0 : index
    %c0_6 = arith.constant 0 : index
    %3 = vector.load %arg3[%c0_5, %c0_6] : memref<1x128xf32, #tpu.memory_space<vmem>>, vector<1x128xf32>
    %cst = arith.constant dense<0.000000e+00> : vector<64x128xf32>
    %4 = tpu.matmul %0, %1, %cst {dimension_numbers = #tpu.dot_dimension_numbers<[1], [0], [0], [1], [0, 0, 1, 1], [], []>} : vector<64x8xf32>, vector<8x128xf32>, vector<64x128xf32> -> vector<64x128xf32>
    %5 = vector.broadcast %3 : vector<1x128xf32> to vector<64x128xf32>
    %6 = arith.addf %4, %5 : vector<64x128xf32>
    %cst_7 = arith.constant 0.000000e+00 : f32
    %7 = vector.broadcast %cst_7 : f32 to vector<8x32xf32>
    %cst_8 = arith.constant 0.000000e+00 : f32
    %8 = vector.broadcast %cst_8 : f32 to vector<8x32xf32>
    %9 = vector.extract_strided_slice %6 {offsets = [0, 0], sizes = [8, 128], strides = [1, 1]} : vector<64x128xf32> to vector<8x128xf32>
    %cst_9 = arith.constant dense<0.000000e+00> : vector<8x128xf32>
    %10 = tpu.matmul %7, %2, %cst_9 {dimension_numbers = #tpu.dot_dimension_numbers<[1], [0], [0], [1], [0, 0, 1, 1], [], []>} : vector<8x32xf32>, vector<32x128xf32>, vector<8x128xf32> -> vector<8x128xf32>
    %11 = arith.addf %9, %10 : vector<8x128xf32>
    %12 = arith.negf %11 : vector<8x128xf32>
    %13 = math.exp %12 : vector<8x128xf32>
    %cst_10 = arith.constant 1.000000e+00 : f32
    %14 = vector.broadcast %cst_10 : f32 to vector<8x128xf32>
    %15 = arith.addf %14, %13 : vector<8x128xf32>
    %16 = arith.divf %14, %15 : vector<8x128xf32>
    %17 = math.tanh %11 : vector<8x128xf32>
    %18 = vector.extract_strided_slice %16 {offsets = [0, 0], sizes = [8, 32], strides = [1, 1]} : vector<8x128xf32> to vector<8x32xf32>
    %19 = vector.extract_strided_slice %16 {offsets = [0, 32], sizes = [8, 32], strides = [1, 1]} : vector<8x128xf32> to vector<8x32xf32>
    %20 = vector.extract_strided_slice %17 {offsets = [0, 64], sizes = [8, 32], strides = [1, 1]} : vector<8x128xf32> to vector<8x32xf32>
    %21 = vector.extract_strided_slice %16 {offsets = [0, 96], sizes = [8, 32], strides = [1, 1]} : vector<8x128xf32> to vector<8x32xf32>
    %22 = arith.mulf %19, %8 : vector<8x32xf32>
    %23 = arith.mulf %18, %20 : vector<8x32xf32>
    %24 = arith.addf %22, %23 : vector<8x32xf32>
    %25 = math.tanh %24 : vector<8x32xf32>
    %26 = arith.mulf %21, %25 : vector<8x32xf32>
    %c0_11 = arith.constant 0 : index
    %c0_12 = arith.constant 0 : index
    %27 = vector.load %arg9[%c0_11, %c0_12] : memref<64x32xf32, #tpu.memory_space<vmem>>, vector<8x32xf32>
    tpu.vector_store %arg9[%c0_11, %c0_12], %26 {strides = array<i32>} : memref<64x32xf32, #tpu.memory_space<vmem>>, vector<8x32xf32>,
    %28 = vector.extract_strided_slice %6 {offsets = [8, 0], sizes = [8, 128], strides = [1, 1]} : vector<64x128xf32> to vector<8x128xf32>
    %cst_13 = arith.constant dense<0.000000e+00> : vector<8x128xf32>
    %29 = tpu.matmul %26, %2, %cst_13 {dimension_numbers = #tpu.dot_dimension_numbers<[1], [0], [0], [1], [0, 0, 1, 1], [], []>} : vector<8x32xf32>, vector<32x128xf32>, vector<8x128xf32> -> vector<8x128xf32>
    %30 = arith.addf %28, %29 : vector<8x128xf32>
    %31 = arith.negf %30 : vector<8x128xf32>
    %32 = math.exp %31 : vector<8x128xf32>
    %cst_14 = arith.constant 1.000000e+00 : f32
    %33 = vector.broadcast %cst_14 : f32 to vector<8x128xf32>
    %34 = arith.addf %33, %32 : vector<8x128xf32>
    %35 = arith.divf %33, %34 : vector<8x128xf32>
    %36 = math.tanh %30 : vector<8x128xf32>
    %37 = vector.extract_strided_slice %35 {offsets = [0, 0], sizes = [8, 32], strides = [1, 1]} : vector<8x128xf32> to vector<8x32xf32>
    %38 = vector.extract_strided_slice %35 {offsets = [0, 32], sizes = [8, 32], strides = [1, 1]} : vector<8x128xf32> to vector<8x32xf32>
    %39 = vector.extract_strided_slice %36 {offsets = [0, 64], sizes = [8, 32], strides = [1, 1]} : vector<8x128xf32> to vector<8x32xf32>
    %40 = vector.extract_strided_slice %35 {offsets = [0, 96], sizes = [8, 32], strides = [1, 1]} : vector<8x128xf32> to vector<8x32xf32>
    %41 = arith.mulf %38, %24 : vector<8x32xf32>
    %42 = arith.mulf %37, %39 : vector<8x32xf32>
    %43 = arith.addf %41, %42 : vector<8x32xf32>
    %44 = math.tanh %43 : vector<8x32xf32>
    %45 = arith.mulf %40, %44 : vector<8x32xf32>
    %c8 = arith.constant 8 : index
    %c0_15 = arith.constant 0 : index
    %46 = vector.load %arg9[%c8, %c0_15] : memref<64x32xf32, #tpu.memory_space<vmem>>, vector<8x32xf32>
    tpu.vector_store %arg9[%c8, %c0_15], %45 {strides = array<i32>} : memref<64x32xf32, #tpu.memory_space<vmem>>, vector<8x32xf32>,
    %47 = vector.extract_strided_slice %6 {offsets = [16, 0], sizes = [8, 128], strides = [1, 1]} : vector<64x128xf32> to vector<8x128xf32>
    %cst_16 = arith.constant dense<0.000000e+00> : vector<8x128xf32>
    %48 = tpu.matmul %45, %2, %cst_16 {dimension_numbers = #tpu.dot_dimension_numbers<[1], [0], [0], [1], [0, 0, 1, 1], [], []>} : vector<8x32xf32>, vector<32x128xf32>, vector<8x128xf32> -> vector<8x128xf32>
    %49 = arith.addf %47, %48 : vector<8x128xf32>
    %50 = arith.negf %49 : vector<8x128xf32>
    %51 = math.exp %50 : vector<8x128xf32>
    %cst_17 = arith.constant 1.000000e+00 : f32
    %52 = vector.broadcast %cst_17 : f32 to vector<8x128xf32>
    %53 = arith.addf %52, %51 : vector<8x128xf32>
    %54 = arith.divf %52, %53 : vector<8x128xf32>
    %55 = math.tanh %49 : vector<8x128xf32>
    %56 = vector.extract_strided_slice %54 {offsets = [0, 0], sizes = [8, 32], strides = [1, 1]} : vector<8x128xf32> to vector<8x32xf32>
    %57 = vector.extract_strided_slice %54 {offsets = [0, 32], sizes = [8, 32], strides = [1, 1]} : vector<8x128xf32> to vector<8x32xf32>
    %58 = vector.extract_strided_slice %55 {offsets = [0, 64], sizes = [8, 32], strides = [1, 1]} : vector<8x128xf32> to vector<8x32xf32>
    %59 = vector.extract_strided_slice %54 {offsets = [0, 96], sizes = [8, 32], strides = [1, 1]} : vector<8x128xf32> to vector<8x32xf32>
    %60 = arith.mulf %57, %43 : vector<8x32xf32>
    %61 = arith.mulf %56, %58 : vector<8x32xf32>
    %62 = arith.addf %60, %61 : vector<8x32xf32>
    %63 = math.tanh %62 : vector<8x32xf32>
    %64 = arith.mulf %59, %63 : vector<8x32xf32>
    %c16 = arith.constant 16 : index
    %c0_18 = arith.constant 0 : index
    %65 = vector.load %arg9[%c16, %c0_18] : memref<64x32xf32, #tpu.memory_space<vmem>>, vector<8x32xf32>
    tpu.vector_store %arg9[%c16, %c0_18], %64 {strides = array<i32>} : memref<64x32xf32, #tpu.memory_space<vmem>>, vector<8x32xf32>,
    %66 = vector.extract_strided_slice %6 {offsets = [24, 0], sizes = [8, 128], strides = [1, 1]} : vector<64x128xf32> to vector<8x128xf32>
    %cst_19 = arith.constant dense<0.000000e+00> : vector<8x128xf32>
    %67 = tpu.matmul %64, %2, %cst_19 {dimension_numbers = #tpu.dot_dimension_numbers<[1], [0], [0], [1], [0, 0, 1, 1], [], []>} : vector<8x32xf32>, vector<32x128xf32>, vector<8x128xf32> -> vector<8x128xf32>
    %68 = arith.addf %66, %67 : vector<8x128xf32>
    %69 = arith.negf %68 : vector<8x128xf32>
    %70 = math.exp %69 : vector<8x128xf32>
    %cst_20 = arith.constant 1.000000e+00 : f32
    %71 = vector.broadcast %cst_20 : f32 to vector<8x128xf32>
    %72 = arith.addf %71, %70 : vector<8x128xf32>
    %73 = arith.divf %71, %72 : vector<8x128xf32>
    %74 = math.tanh %68 : vector<8x128xf32>
    %75 = vector.extract_strided_slice %73 {offsets = [0, 0], sizes = [8, 32], strides = [1, 1]} : vector<8x128xf32> to vector<8x32xf32>
    %76 = vector.extract_strided_slice %73 {offsets = [0, 32], sizes = [8, 32], strides = [1, 1]} : vector<8x128xf32> to vector<8x32xf32>
    %77 = vector.extract_strided_slice %74 {offsets = [0, 64], sizes = [8, 32], strides = [1, 1]} : vector<8x128xf32> to vector<8x32xf32>
    %78 = vector.extract_strided_slice %73 {offsets = [0, 96], sizes = [8, 32], strides = [1, 1]} : vector<8x128xf32> to vector<8x32xf32>
    %79 = arith.mulf %76, %62 : vector<8x32xf32>
    %80 = arith.mulf %75, %77 : vector<8x32xf32>
    %81 = arith.addf %79, %80 : vector<8x32xf32>
    %82 = math.tanh %81 : vector<8x32xf32>
    %83 = arith.mulf %78, %82 : vector<8x32xf32>
    %c24 = arith.constant 24 : index
    %c0_21 = arith.constant 0 : index
    %84 = vector.load %arg9[%c24, %c0_21] : memref<64x32xf32, #tpu.memory_space<vmem>>, vector<8x32xf32>
    tpu.vector_store %arg9[%c24, %c0_21], %83 {strides = array<i32>} : memref<64x32xf32, #tpu.memory_space<vmem>>, vector<8x32xf32>,
    %85 = vector.extract_strided_slice %6 {offsets = [32, 0], sizes = [8, 128], strides = [1, 1]} : vector<64x128xf32> to vector<8x128xf32>
    %cst_22 = arith.constant dense<0.000000e+00> : vector<8x128xf32>
    %86 = tpu.matmul %83, %2, %cst_22 {dimension_numbers = #tpu.dot_dimension_numbers<[1], [0], [0], [1], [0, 0, 1, 1], [], []>} : vector<8x32xf32>, vector<32x128xf32>, vector<8x128xf32> -> vector<8x128xf32>
    %87 = arith.addf %85, %86 : vector<8x128xf32>
    %88 = arith.negf %87 : vector<8x128xf32>
    %89 = math.exp %88 : vector<8x128xf32>
    %cst_23 = arith.constant 1.000000e+00 : f32
    %90 = vector.broadcast %cst_23 : f32 to vector<8x128xf32>
    %91 = arith.addf %90, %89 : vector<8x128xf32>
    %92 = arith.divf %90, %91 : vector<8x128xf32>
    %93 = math.tanh %87 : vector<8x128xf32>
    %94 = vector.extract_strided_slice %92 {offsets = [0, 0], sizes = [8, 32], strides = [1, 1]} : vector<8x128xf32> to vector<8x32xf32>
    %95 = vector.extract_strided_slice %92 {offsets = [0, 32], sizes = [8, 32], strides = [1, 1]} : vector<8x128xf32> to vector<8x32xf32>
    %96 = vector.extract_strided_slice %93 {offsets = [0, 64], sizes = [8, 32], strides = [1, 1]} : vector<8x128xf32> to vector<8x32xf32>
    %97 = vector.extract_strided_slice %92 {offsets = [0, 96], sizes = [8, 32], strides = [1, 1]} : vector<8x128xf32> to vector<8x32xf32>
    %98 = arith.mulf %95, %81 : vector<8x32xf32>
    %99 = arith.mulf %94, %96 : vector<8x32xf32>
    %100 = arith.addf %98, %99 : vector<8x32xf32>
    %101 = math.tanh %100 : vector<8x32xf32>
    %102 = arith.mulf %97, %101 : vector<8x32xf32>
    %c32 = arith.constant 32 : index
    %c0_24 = arith.constant 0 : index
    %103 = vector.load %arg9[%c32, %c0_24] : memref<64x32xf32, #tpu.memory_space<vmem>>, vector<8x32xf32>
    tpu.vector_store %arg9[%c32, %c0_24], %102 {strides = array<i32>} : memref<64x32xf32, #tpu.memory_space<vmem>>, vector<8x32xf32>,
    %104 = vector.extract_strided_slice %6 {offsets = [40, 0], sizes = [8, 128], strides = [1, 1]} : vector<64x128xf32> to vector<8x128xf32>
    %cst_25 = arith.constant dense<0.000000e+00> : vector<8x128xf32>
    %105 = tpu.matmul %102, %2, %cst_25 {dimension_numbers = #tpu.dot_dimension_numbers<[1], [0], [0], [1], [0, 0, 1, 1], [], []>} : vector<8x32xf32>, vector<32x128xf32>, vector<8x128xf32> -> vector<8x128xf32>
    %106 = arith.addf %104, %105 : vector<8x128xf32>
    %107 = arith.negf %106 : vector<8x128xf32>
    %108 = math.exp %107 : vector<8x128xf32>
    %cst_26 = arith.constant 1.000000e+00 : f32
    %109 = vector.broadcast %cst_26 : f32 to vector<8x128xf32>
    %110 = arith.addf %109, %108 : vector<8x128xf32>
    %111 = arith.divf %109, %110 : vector<8x128xf32>
    %112 = math.tanh %106 : vector<8x128xf32>
    %113 = vector.extract_strided_slice %111 {offsets = [0, 0], sizes = [8, 32], strides = [1, 1]} : vector<8x128xf32> to vector<8x32xf32>
    %114 = vector.extract_strided_slice %111 {offsets = [0, 32], sizes = [8, 32], strides = [1, 1]} : vector<8x128xf32> to vector<8x32xf32>
    %115 = vector.extract_strided_slice %112 {offsets = [0, 64], sizes = [8, 32], strides = [1, 1]} : vector<8x128xf32> to vector<8x32xf32>
    %116 = vector.extract_strided_slice %111 {offsets = [0, 96], sizes = [8, 32], strides = [1, 1]} : vector<8x128xf32> to vector<8x32xf32>
    %117 = arith.mulf %114, %100 : vector<8x32xf32>
    %118 = arith.mulf %113, %115 : vector<8x32xf32>
    %119 = arith.addf %117, %118 : vector<8x32xf32>
    %120 = math.tanh %119 : vector<8x32xf32>
    %121 = arith.mulf %116, %120 : vector<8x32xf32>
    %c40 = arith.constant 40 : index
    %c0_27 = arith.constant 0 : index
    %122 = vector.load %arg9[%c40, %c0_27] : memref<64x32xf32, #tpu.memory_space<vmem>>, vector<8x32xf32>
    tpu.vector_store %arg9[%c40, %c0_27], %121 {strides = array<i32>} : memref<64x32xf32, #tpu.memory_space<vmem>>, vector<8x32xf32>,
    %123 = vector.extract_strided_slice %6 {offsets = [48, 0], sizes = [8, 128], strides = [1, 1]} : vector<64x128xf32> to vector<8x128xf32>
    %cst_28 = arith.constant dense<0.000000e+00> : vector<8x128xf32>
    %124 = tpu.matmul %121, %2, %cst_28 {dimension_numbers = #tpu.dot_dimension_numbers<[1], [0], [0], [1], [0, 0, 1, 1], [], []>} : vector<8x32xf32>, vector<32x128xf32>, vector<8x128xf32> -> vector<8x128xf32>
    %125 = arith.addf %123, %124 : vector<8x128xf32>
    %126 = arith.negf %125 : vector<8x128xf32>
    %127 = math.exp %126 : vector<8x128xf32>
    %cst_29 = arith.constant 1.000000e+00 : f32
    %128 = vector.broadcast %cst_29 : f32 to vector<8x128xf32>
    %129 = arith.addf %128, %127 : vector<8x128xf32>
    %130 = arith.divf %128, %129 : vector<8x128xf32>
    %131 = math.tanh %125 : vector<8x128xf32>
    %132 = vector.extract_strided_slice %130 {offsets = [0, 0], sizes = [8, 32], strides = [1, 1]} : vector<8x128xf32> to vector<8x32xf32>
    %133 = vector.extract_strided_slice %130 {offsets = [0, 32], sizes = [8, 32], strides = [1, 1]} : vector<8x128xf32> to vector<8x32xf32>
    %134 = vector.extract_strided_slice %131 {offsets = [0, 64], sizes = [8, 32], strides = [1, 1]} : vector<8x128xf32> to vector<8x32xf32>
    %135 = vector.extract_strided_slice %130 {offsets = [0, 96], sizes = [8, 32], strides = [1, 1]} : vector<8x128xf32> to vector<8x32xf32>
    %136 = arith.mulf %133, %119 : vector<8x32xf32>
    %137 = arith.mulf %132, %134 : vector<8x32xf32>
    %138 = arith.addf %136, %137 : vector<8x32xf32>
    %139 = math.tanh %138 : vector<8x32xf32>
    %140 = arith.mulf %135, %139 : vector<8x32xf32>
    %c48 = arith.constant 48 : index
    %c0_30 = arith.constant 0 : index
    %141 = vector.load %arg9[%c48, %c0_30] : memref<64x32xf32, #tpu.memory_space<vmem>>, vector<8x32xf32>
    tpu.vector_store %arg9[%c48, %c0_30], %140 {strides = array<i32>} : memref<64x32xf32, #tpu.memory_space<vmem>>, vector<8x32xf32>,
    %142 = vector.extract_strided_slice %6 {offsets = [56, 0], sizes = [8, 128], strides = [1, 1]} : vector<64x128xf32> to vector<8x128xf32>
    %cst_31 = arith.constant dense<0.000000e+00> : vector<8x128xf32>
    %143 = tpu.matmul %140, %2, %cst_31 {dimension_numbers = #tpu.dot_dimension_numbers<[1], [0], [0], [1], [0, 0, 1, 1], [], []>} : vector<8x32xf32>, vector<32x128xf32>, vector<8x128xf32> -> vector<8x128xf32>
    %144 = arith.addf %142, %143 : vector<8x128xf32>
    %145 = arith.negf %144 : vector<8x128xf32>
    %146 = math.exp %145 : vector<8x128xf32>
    %cst_32 = arith.constant 1.000000e+00 : f32
    %147 = vector.broadcast %cst_32 : f32 to vector<8x128xf32>
    %148 = arith.addf %147, %146 : vector<8x128xf32>
    %149 = arith.divf %147, %148 : vector<8x128xf32>
    %150 = math.tanh %144 : vector<8x128xf32>
    %151 = vector.extract_strided_slice %149 {offsets = [0, 0], sizes = [8, 32], strides = [1, 1]} : vector<8x128xf32> to vector<8x32xf32>
    %152 = vector.extract_strided_slice %149 {offsets = [0, 32], sizes = [8, 32], strides = [1, 1]} : vector<8x128xf32> to vector<8x32xf32>
    %153 = vector.extract_strided_slice %150 {offsets = [0, 64], sizes = [8, 32], strides = [1, 1]} : vector<8x128xf32> to vector<8x32xf32>
    %154 = vector.extract_strided_slice %149 {offsets = [0, 96], sizes = [8, 32], strides = [1, 1]} : vector<8x128xf32> to vector<8x32xf32>
    %155 = arith.mulf %152, %138 : vector<8x32xf32>
    %156 = arith.mulf %151, %153 : vector<8x32xf32>
    %157 = arith.addf %155, %156 : vector<8x32xf32>
    %158 = math.tanh %157 : vector<8x32xf32>
    %159 = arith.mulf %154, %158 : vector<8x32xf32>
    %c56 = arith.constant 56 : index
    %c0_33 = arith.constant 0 : index
    %160 = vector.load %arg9[%c56, %c0_33] : memref<64x32xf32, #tpu.memory_space<vmem>>, vector<8x32xf32>
    tpu.vector_store %arg9[%c56, %c0_33], %159 {strides = array<i32>} : memref<64x32xf32, #tpu.memory_space<vmem>>, vector<8x32xf32>,
    %c0_34 = arith.constant 0 : index
    %c0_35 = arith.constant 0 : index
    %161 = vector.load %arg9[%c0_34, %c0_35] : memref<64x32xf32, #tpu.memory_space<vmem>>, vector<64x32xf32>
    %c0_36 = arith.constant 0 : index
    %c0_37 = arith.constant 0 : index
    %162 = vector.load %arg4[%c0_36, %c0_37] : memref<32x128xf32, #tpu.memory_space<vmem>>, vector<32x128xf32>
    %c0_38 = arith.constant 0 : index
    %c0_39 = arith.constant 0 : index
    %163 = vector.load %arg5[%c0_38, %c0_39] : memref<32x128xf32, #tpu.memory_space<vmem>>, vector<32x128xf32>
    %c0_40 = arith.constant 0 : index
    %c0_41 = arith.constant 0 : index
    %164 = vector.load %arg6[%c0_40, %c0_41] : memref<1x128xf32, #tpu.memory_space<vmem>>, vector<1x128xf32>
    %cst_42 = arith.constant dense<0.000000e+00> : vector<64x128xf32>
    %165 = tpu.matmul %161, %162, %cst_42 {dimension_numbers = #tpu.dot_dimension_numbers<[1], [0], [0], [1], [0, 0, 1, 1], [], []>} : vector<64x32xf32>, vector<32x128xf32>, vector<64x128xf32> -> vector<64x128xf32>
    %166 = vector.broadcast %164 : vector<1x128xf32> to vector<64x128xf32>
    %167 = arith.addf %165, %166 : vector<64x128xf32>
    %cst_43 = arith.constant 0.000000e+00 : f32
    %168 = vector.broadcast %cst_43 : f32 to vector<8x32xf32>
    %cst_44 = arith.constant 0.000000e+00 : f32
    %169 = vector.broadcast %cst_44 : f32 to vector<8x32xf32>
    %170 = vector.extract_strided_slice %167 {offsets = [0, 0], sizes = [8, 128], strides = [1, 1]} : vector<64x128xf32> to vector<8x128xf32>
    %cst_45 = arith.constant dense<0.000000e+00> : vector<8x128xf32>
    %171 = tpu.matmul %168, %163, %cst_45 {dimension_numbers = #tpu.dot_dimension_numbers<[1], [0], [0], [1], [0, 0, 1, 1], [], []>} : vector<8x32xf32>, vector<32x128xf32>, vector<8x128xf32> -> vector<8x128xf32>
    %172 = arith.addf %170, %171 : vector<8x128xf32>
    %173 = arith.negf %172 : vector<8x128xf32>
    %174 = math.exp %173 : vector<8x128xf32>
    %cst_46 = arith.constant 1.000000e+00 : f32
    %175 = vector.broadcast %cst_46 : f32 to vector<8x128xf32>
    %176 = arith.addf %175, %174 : vector<8x128xf32>
    %177 = arith.divf %175, %176 : vector<8x128xf32>
    %178 = math.tanh %172 : vector<8x128xf32>
    %179 = vector.extract_strided_slice %177 {offsets = [0, 0], sizes = [8, 32], strides = [1, 1]} : vector<8x128xf32> to vector<8x32xf32>
    %180 = vector.extract_strided_slice %177 {offsets = [0, 32], sizes = [8, 32], strides = [1, 1]} : vector<8x128xf32> to vector<8x32xf32>
    %181 = vector.extract_strided_slice %178 {offsets = [0, 64], sizes = [8, 32], strides = [1, 1]} : vector<8x128xf32> to vector<8x32xf32>
    %182 = vector.extract_strided_slice %177 {offsets = [0, 96], sizes = [8, 32], strides = [1, 1]} : vector<8x128xf32> to vector<8x32xf32>
    %183 = arith.mulf %180, %169 : vector<8x32xf32>
    %184 = arith.mulf %179, %181 : vector<8x32xf32>
    %185 = arith.addf %183, %184 : vector<8x32xf32>
    %186 = math.tanh %185 : vector<8x32xf32>
    %187 = arith.mulf %182, %186 : vector<8x32xf32>
    %c0_47 = arith.constant 0 : index
    %c0_48 = arith.constant 0 : index
    %188 = vector.load %arg9[%c0_47, %c0_48] : memref<64x32xf32, #tpu.memory_space<vmem>>, vector<8x32xf32>
    tpu.vector_store %arg9[%c0_47, %c0_48], %187 {strides = array<i32>} : memref<64x32xf32, #tpu.memory_space<vmem>>, vector<8x32xf32>,
    %189 = vector.extract_strided_slice %167 {offsets = [8, 0], sizes = [8, 128], strides = [1, 1]} : vector<64x128xf32> to vector<8x128xf32>
    %cst_49 = arith.constant dense<0.000000e+00> : vector<8x128xf32>
    %190 = tpu.matmul %187, %163, %cst_49 {dimension_numbers = #tpu.dot_dimension_numbers<[1], [0], [0], [1], [0, 0, 1, 1], [], []>} : vector<8x32xf32>, vector<32x128xf32>, vector<8x128xf32> -> vector<8x128xf32>
    %191 = arith.addf %189, %190 : vector<8x128xf32>
    %192 = arith.negf %191 : vector<8x128xf32>
    %193 = math.exp %192 : vector<8x128xf32>
    %cst_50 = arith.constant 1.000000e+00 : f32
    %194 = vector.broadcast %cst_50 : f32 to vector<8x128xf32>
    %195 = arith.addf %194, %193 : vector<8x128xf32>
    %196 = arith.divf %194, %195 : vector<8x128xf32>
    %197 = math.tanh %191 : vector<8x128xf32>
    %198 = vector.extract_strided_slice %196 {offsets = [0, 0], sizes = [8, 32], strides = [1, 1]} : vector<8x128xf32> to vector<8x32xf32>
    %199 = vector.extract_strided_slice %196 {offsets = [0, 32], sizes = [8, 32], strides = [1, 1]} : vector<8x128xf32> to vector<8x32xf32>
    %200 = vector.extract_strided_slice %197 {offsets = [0, 64], sizes = [8, 32], strides = [1, 1]} : vector<8x128xf32> to vector<8x32xf32>
    %201 = vector.extract_strided_slice %196 {offsets = [0, 96], sizes = [8, 32], strides = [1, 1]} : vector<8x128xf32> to vector<8x32xf32>
    %202 = arith.mulf %199, %185 : vector<8x32xf32>
    %203 = arith.mulf %198, %200 : vector<8x32xf32>
    %204 = arith.addf %202, %203 : vector<8x32xf32>
    %205 = math.tanh %204 : vector<8x32xf32>
    %206 = arith.mulf %201, %205 : vector<8x32xf32>
    %c8_51 = arith.constant 8 : index
    %c0_52 = arith.constant 0 : index
    %207 = vector.load %arg9[%c8_51, %c0_52] : memref<64x32xf32, #tpu.memory_space<vmem>>, vector<8x32xf32>
    tpu.vector_store %arg9[%c8_51, %c0_52], %206 {strides = array<i32>} : memref<64x32xf32, #tpu.memory_space<vmem>>, vector<8x32xf32>,
    %208 = vector.extract_strided_slice %167 {offsets = [16, 0], sizes = [8, 128], strides = [1, 1]} : vector<64x128xf32> to vector<8x128xf32>
    %cst_53 = arith.constant dense<0.000000e+00> : vector<8x128xf32>
    %209 = tpu.matmul %206, %163, %cst_53 {dimension_numbers = #tpu.dot_dimension_numbers<[1], [0], [0], [1], [0, 0, 1, 1], [], []>} : vector<8x32xf32>, vector<32x128xf32>, vector<8x128xf32> -> vector<8x128xf32>
    %210 = arith.addf %208, %209 : vector<8x128xf32>
    %211 = arith.negf %210 : vector<8x128xf32>
    %212 = math.exp %211 : vector<8x128xf32>
    %cst_54 = arith.constant 1.000000e+00 : f32
    %213 = vector.broadcast %cst_54 : f32 to vector<8x128xf32>
    %214 = arith.addf %213, %212 : vector<8x128xf32>
    %215 = arith.divf %213, %214 : vector<8x128xf32>
    %216 = math.tanh %210 : vector<8x128xf32>
    %217 = vector.extract_strided_slice %215 {offsets = [0, 0], sizes = [8, 32], strides = [1, 1]} : vector<8x128xf32> to vector<8x32xf32>
    %218 = vector.extract_strided_slice %215 {offsets = [0, 32], sizes = [8, 32], strides = [1, 1]} : vector<8x128xf32> to vector<8x32xf32>
    %219 = vector.extract_strided_slice %216 {offsets = [0, 64], sizes = [8, 32], strides = [1, 1]} : vector<8x128xf32> to vector<8x32xf32>
    %220 = vector.extract_strided_slice %215 {offsets = [0, 96], sizes = [8, 32], strides = [1, 1]} : vector<8x128xf32> to vector<8x32xf32>
    %221 = arith.mulf %218, %204 : vector<8x32xf32>
    %222 = arith.mulf %217, %219 : vector<8x32xf32>
    %223 = arith.addf %221, %222 : vector<8x32xf32>
    %224 = math.tanh %223 : vector<8x32xf32>
    %225 = arith.mulf %220, %224 : vector<8x32xf32>
    %c16_55 = arith.constant 16 : index
    %c0_56 = arith.constant 0 : index
    %226 = vector.load %arg9[%c16_55, %c0_56] : memref<64x32xf32, #tpu.memory_space<vmem>>, vector<8x32xf32>
    tpu.vector_store %arg9[%c16_55, %c0_56], %225 {strides = array<i32>} : memref<64x32xf32, #tpu.memory_space<vmem>>, vector<8x32xf32>,
    %227 = vector.extract_strided_slice %167 {offsets = [24, 0], sizes = [8, 128], strides = [1, 1]} : vector<64x128xf32> to vector<8x128xf32>
    %cst_57 = arith.constant dense<0.000000e+00> : vector<8x128xf32>
    %228 = tpu.matmul %225, %163, %cst_57 {dimension_numbers = #tpu.dot_dimension_numbers<[1], [0], [0], [1], [0, 0, 1, 1], [], []>} : vector<8x32xf32>, vector<32x128xf32>, vector<8x128xf32> -> vector<8x128xf32>
    %229 = arith.addf %227, %228 : vector<8x128xf32>
    %230 = arith.negf %229 : vector<8x128xf32>
    %231 = math.exp %230 : vector<8x128xf32>
    %cst_58 = arith.constant 1.000000e+00 : f32
    %232 = vector.broadcast %cst_58 : f32 to vector<8x128xf32>
    %233 = arith.addf %232, %231 : vector<8x128xf32>
    %234 = arith.divf %232, %233 : vector<8x128xf32>
    %235 = math.tanh %229 : vector<8x128xf32>
    %236 = vector.extract_strided_slice %234 {offsets = [0, 0], sizes = [8, 32], strides = [1, 1]} : vector<8x128xf32> to vector<8x32xf32>
    %237 = vector.extract_strided_slice %234 {offsets = [0, 32], sizes = [8, 32], strides = [1, 1]} : vector<8x128xf32> to vector<8x32xf32>
    %238 = vector.extract_strided_slice %235 {offsets = [0, 64], sizes = [8, 32], strides = [1, 1]} : vector<8x128xf32> to vector<8x32xf32>
    %239 = vector.extract_strided_slice %234 {offsets = [0, 96], sizes = [8, 32], strides = [1, 1]} : vector<8x128xf32> to vector<8x32xf32>
    %240 = arith.mulf %237, %223 : vector<8x32xf32>
    %241 = arith.mulf %236, %238 : vector<8x32xf32>
    %242 = arith.addf %240, %241 : vector<8x32xf32>
    %243 = math.tanh %242 : vector<8x32xf32>
    %244 = arith.mulf %239, %243 : vector<8x32xf32>
    %c24_59 = arith.constant 24 : index
    %c0_60 = arith.constant 0 : index
    %245 = vector.load %arg9[%c24_59, %c0_60] : memref<64x32xf32, #tpu.memory_space<vmem>>, vector<8x32xf32>
    tpu.vector_store %arg9[%c24_59, %c0_60], %244 {strides = array<i32>} : memref<64x32xf32, #tpu.memory_space<vmem>>, vector<8x32xf32>,
    %246 = vector.extract_strided_slice %167 {offsets = [32, 0], sizes = [8, 128], strides = [1, 1]} : vector<64x128xf32> to vector<8x128xf32>
    %cst_61 = arith.constant dense<0.000000e+00> : vector<8x128xf32>
    %247 = tpu.matmul %244, %163, %cst_61 {dimension_numbers = #tpu.dot_dimension_numbers<[1], [0], [0], [1], [0, 0, 1, 1], [], []>} : vector<8x32xf32>, vector<32x128xf32>, vector<8x128xf32> -> vector<8x128xf32>
    %248 = arith.addf %246, %247 : vector<8x128xf32>
    %249 = arith.negf %248 : vector<8x128xf32>
    %250 = math.exp %249 : vector<8x128xf32>
    %cst_62 = arith.constant 1.000000e+00 : f32
    %251 = vector.broadcast %cst_62 : f32 to vector<8x128xf32>
    %252 = arith.addf %251, %250 : vector<8x128xf32>
    %253 = arith.divf %251, %252 : vector<8x128xf32>
    %254 = math.tanh %248 : vector<8x128xf32>
    %255 = vector.extract_strided_slice %253 {offsets = [0, 0], sizes = [8, 32], strides = [1, 1]} : vector<8x128xf32> to vector<8x32xf32>
    %256 = vector.extract_strided_slice %253 {offsets = [0, 32], sizes = [8, 32], strides = [1, 1]} : vector<8x128xf32> to vector<8x32xf32>
    %257 = vector.extract_strided_slice %254 {offsets = [0, 64], sizes = [8, 32], strides = [1, 1]} : vector<8x128xf32> to vector<8x32xf32>
    %258 = vector.extract_strided_slice %253 {offsets = [0, 96], sizes = [8, 32], strides = [1, 1]} : vector<8x128xf32> to vector<8x32xf32>
    %259 = arith.mulf %256, %242 : vector<8x32xf32>
    %260 = arith.mulf %255, %257 : vector<8x32xf32>
    %261 = arith.addf %259, %260 : vector<8x32xf32>
    %262 = math.tanh %261 : vector<8x32xf32>
    %263 = arith.mulf %258, %262 : vector<8x32xf32>
    %c32_63 = arith.constant 32 : index
    %c0_64 = arith.constant 0 : index
    %264 = vector.load %arg9[%c32_63, %c0_64] : memref<64x32xf32, #tpu.memory_space<vmem>>, vector<8x32xf32>
    tpu.vector_store %arg9[%c32_63, %c0_64], %263 {strides = array<i32>} : memref<64x32xf32, #tpu.memory_space<vmem>>, vector<8x32xf32>,
    %265 = vector.extract_strided_slice %167 {offsets = [40, 0], sizes = [8, 128], strides = [1, 1]} : vector<64x128xf32> to vector<8x128xf32>
    %cst_65 = arith.constant dense<0.000000e+00> : vector<8x128xf32>
    %266 = tpu.matmul %263, %163, %cst_65 {dimension_numbers = #tpu.dot_dimension_numbers<[1], [0], [0], [1], [0, 0, 1, 1], [], []>} : vector<8x32xf32>, vector<32x128xf32>, vector<8x128xf32> -> vector<8x128xf32>
    %267 = arith.addf %265, %266 : vector<8x128xf32>
    %268 = arith.negf %267 : vector<8x128xf32>
    %269 = math.exp %268 : vector<8x128xf32>
    %cst_66 = arith.constant 1.000000e+00 : f32
    %270 = vector.broadcast %cst_66 : f32 to vector<8x128xf32>
    %271 = arith.addf %270, %269 : vector<8x128xf32>
    %272 = arith.divf %270, %271 : vector<8x128xf32>
    %273 = math.tanh %267 : vector<8x128xf32>
    %274 = vector.extract_strided_slice %272 {offsets = [0, 0], sizes = [8, 32], strides = [1, 1]} : vector<8x128xf32> to vector<8x32xf32>
    %275 = vector.extract_strided_slice %272 {offsets = [0, 32], sizes = [8, 32], strides = [1, 1]} : vector<8x128xf32> to vector<8x32xf32>
    %276 = vector.extract_strided_slice %273 {offsets = [0, 64], sizes = [8, 32], strides = [1, 1]} : vector<8x128xf32> to vector<8x32xf32>
    %277 = vector.extract_strided_slice %272 {offsets = [0, 96], sizes = [8, 32], strides = [1, 1]} : vector<8x128xf32> to vector<8x32xf32>
    %278 = arith.mulf %275, %261 : vector<8x32xf32>
    %279 = arith.mulf %274, %276 : vector<8x32xf32>
    %280 = arith.addf %278, %279 : vector<8x32xf32>
    %281 = math.tanh %280 : vector<8x32xf32>
    %282 = arith.mulf %277, %281 : vector<8x32xf32>
    %c40_67 = arith.constant 40 : index
    %c0_68 = arith.constant 0 : index
    %283 = vector.load %arg9[%c40_67, %c0_68] : memref<64x32xf32, #tpu.memory_space<vmem>>, vector<8x32xf32>
    tpu.vector_store %arg9[%c40_67, %c0_68], %282 {strides = array<i32>} : memref<64x32xf32, #tpu.memory_space<vmem>>, vector<8x32xf32>,
    %284 = vector.extract_strided_slice %167 {offsets = [48, 0], sizes = [8, 128], strides = [1, 1]} : vector<64x128xf32> to vector<8x128xf32>
    %cst_69 = arith.constant dense<0.000000e+00> : vector<8x128xf32>
    %285 = tpu.matmul %282, %163, %cst_69 {dimension_numbers = #tpu.dot_dimension_numbers<[1], [0], [0], [1], [0, 0, 1, 1], [], []>} : vector<8x32xf32>, vector<32x128xf32>, vector<8x128xf32> -> vector<8x128xf32>
    %286 = arith.addf %284, %285 : vector<8x128xf32>
    %287 = arith.negf %286 : vector<8x128xf32>
    %288 = math.exp %287 : vector<8x128xf32>
    %cst_70 = arith.constant 1.000000e+00 : f32
    %289 = vector.broadcast %cst_70 : f32 to vector<8x128xf32>
    %290 = arith.addf %289, %288 : vector<8x128xf32>
    %291 = arith.divf %289, %290 : vector<8x128xf32>
    %292 = math.tanh %286 : vector<8x128xf32>
    %293 = vector.extract_strided_slice %291 {offsets = [0, 0], sizes = [8, 32], strides = [1, 1]} : vector<8x128xf32> to vector<8x32xf32>
    %294 = vector.extract_strided_slice %291 {offsets = [0, 32], sizes = [8, 32], strides = [1, 1]} : vector<8x128xf32> to vector<8x32xf32>
    %295 = vector.extract_strided_slice %292 {offsets = [0, 64], sizes = [8, 32], strides = [1, 1]} : vector<8x128xf32> to vector<8x32xf32>
    %296 = vector.extract_strided_slice %291 {offsets = [0, 96], sizes = [8, 32], strides = [1, 1]} : vector<8x128xf32> to vector<8x32xf32>
    %297 = arith.mulf %294, %280 : vector<8x32xf32>
    %298 = arith.mulf %293, %295 : vector<8x32xf32>
    %299 = arith.addf %297, %298 : vector<8x32xf32>
    %300 = math.tanh %299 : vector<8x32xf32>
    %301 = arith.mulf %296, %300 : vector<8x32xf32>
    %c48_71 = arith.constant 48 : index
    %c0_72 = arith.constant 0 : index
    %302 = vector.load %arg9[%c48_71, %c0_72] : memref<64x32xf32, #tpu.memory_space<vmem>>, vector<8x32xf32>
    tpu.vector_store %arg9[%c48_71, %c0_72], %301 {strides = array<i32>} : memref<64x32xf32, #tpu.memory_space<vmem>>, vector<8x32xf32>,
    %303 = vector.extract_strided_slice %167 {offsets = [56, 0], sizes = [8, 128], strides = [1, 1]} : vector<64x128xf32> to vector<8x128xf32>
    %cst_73 = arith.constant dense<0.000000e+00> : vector<8x128xf32>
    %304 = tpu.matmul %301, %163, %cst_73 {dimension_numbers = #tpu.dot_dimension_numbers<[1], [0], [0], [1], [0, 0, 1, 1], [], []>} : vector<8x32xf32>, vector<32x128xf32>, vector<8x128xf32> -> vector<8x128xf32>
    %305 = arith.addf %303, %304 : vector<8x128xf32>
    %306 = arith.negf %305 : vector<8x128xf32>
    %307 = math.exp %306 : vector<8x128xf32>
    %cst_74 = arith.constant 1.000000e+00 : f32
    %308 = vector.broadcast %cst_74 : f32 to vector<8x128xf32>
    %309 = arith.addf %308, %307 : vector<8x128xf32>
    %310 = arith.divf %308, %309 : vector<8x128xf32>
    %311 = math.tanh %305 : vector<8x128xf32>
    %312 = vector.extract_strided_slice %310 {offsets = [0, 0], sizes = [8, 32], strides = [1, 1]} : vector<8x128xf32> to vector<8x32xf32>
    %313 = vector.extract_strided_slice %310 {offsets = [0, 32], sizes = [8, 32], strides = [1, 1]} : vector<8x128xf32> to vector<8x32xf32>
    %314 = vector.extract_strided_slice %311 {offsets = [0, 64], sizes = [8, 32], strides = [1, 1]} : vector<8x128xf32> to vector<8x32xf32>
    %315 = vector.extract_strided_slice %310 {offsets = [0, 96], sizes = [8, 32], strides = [1, 1]} : vector<8x128xf32> to vector<8x32xf32>
    %316 = arith.mulf %313, %299 : vector<8x32xf32>
    %317 = arith.mulf %312, %314 : vector<8x32xf32>
    %318 = arith.addf %316, %317 : vector<8x32xf32>
    %319 = math.tanh %318 : vector<8x32xf32>
    %320 = arith.mulf %315, %319 : vector<8x32xf32>
    %c56_75 = arith.constant 56 : index
    %c0_76 = arith.constant 0 : index
    %321 = vector.load %arg9[%c56_75, %c0_76] : memref<64x32xf32, #tpu.memory_space<vmem>>, vector<8x32xf32>
    tpu.vector_store %arg9[%c56_75, %c0_76], %320 {strides = array<i32>} : memref<64x32xf32, #tpu.memory_space<vmem>>, vector<8x32xf32>,
    %c0_77 = arith.constant 0 : index
    %c0_78 = arith.constant 0 : index
    %322 = vector.load %arg9[%c0_77, %c0_78] : memref<64x32xf32, #tpu.memory_space<vmem>>, vector<64x32xf32>
    %c0_79 = arith.constant 0 : index
    %c0_80 = arith.constant 0 : index
    %323 = vector.load %arg7[%c0_79, %c0_80] : memref<32x2xf32, #tpu.memory_space<vmem>>, vector<32x2xf32>
    %cst_81 = arith.constant dense<0.000000e+00> : vector<64x2xf32>
    %324 = tpu.matmul %322, %323, %cst_81 {dimension_numbers = #tpu.dot_dimension_numbers<[1], [0], [0], [1], [0, 0, 1, 1], [], []>} : vector<64x32xf32>, vector<32x2xf32>, vector<64x2xf32> -> vector<64x2xf32>
    %c0_82 = arith.constant 0 : index
    %c0_83 = arith.constant 0 : index
    %325 = vector.load %arg8[%c0_82, %c0_83] : memref<64x2xf32, #tpu.memory_space<vmem>>, vector<64x2xf32>
    tpu.vector_store %arg8[%c0_82, %c0_83], %324 {strides = array<i32>} : memref<64x2xf32, #tpu.memory_space<vmem>>, vector<64x2xf32>,
    return
  }
}

</mosaic_0001>

<llo_original>
// kernel: lstm_small_forward.1
$region0: #{lstm_small_forward.1}
  #allocation0 [shape = 'u32[]', space=smem, size = 0x4, offset = 0x4, fixed_abs, tag = 'smem constant byte address 0x4 - core index']
  #allocation1 [shape = 'u32[144,128]{1,0:T(1,128)}', space=vmem, size = 0x12000, scoped, tag = 'internal scratch']
  #allocation2 [shape = 'f32[64,32]{1,0:T(8,128)}', space=vmem, size = 0x8000, scoped, tag = 'scratch operand']
  %s0 = inlined_call_operand.vmem [shape: f32[64,8], index: 0, kind: input, shape index: {}]
  %s1 = inlined_call_operand.vmem [shape: f32[8,128], index: 1, kind: input, shape index: {}]
  %s2 = inlined_call_operand.vmem [shape: f32[32,128], index: 2, kind: input, shape index: {}]
  %s3 = inlined_call_operand.vmem [shape: f32[1,128], index: 3, kind: input, shape index: {}]
  %s4 = inlined_call_operand.vmem [shape: f32[32,128], index: 4, kind: input, shape index: {}]
  %s5 = inlined_call_operand.vmem [shape: f32[32,128], index: 5, kind: input, shape index: {}]
  %s6 = inlined_call_operand.vmem [shape: f32[1,128], index: 6, kind: input, shape index: {}]
  %s7 = inlined_call_operand.vmem [shape: f32[32,2], index: 7, kind: input, shape index: {}]
  %s8 = inlined_call_operand.vmem [shape: f32[64,2], index: 8, kind: output, shape index: {}]
  %s9 = sld [smem:[#allocation0]]
  $region42: #{lstm_small_forward.1} parent=0
    _
  %s11 = ssub.s32 1, %s9
  %s12 = scalar_select 0, %s11, %s9
  // Predicated region
  $region2: #{lstm_small_forward.1} parent=0 // pred_check
    _
  $region3: #{lstm_small_forward.1} parent=0 // pred_check_branch
    %14 = sbr.rel (0) target = $region5
  $region4: #{lstm_small_forward.1} parent=0 // pred_region
    _
  $region5: #{lstm_small_forward.1} parent=0 // pred_fallthru
    _
  // Predicated region
  $region6: #{lstm_small_forward.1} parent=0 // pred_check
    _
  $region7: #{lstm_small_forward.1} parent=0 // pred_check_branch
    %16 = sbr.rel (0) target = $region9
  $region8: #{lstm_small_forward.1} parent=0 // pred_region
    _
  $region9: #{lstm_small_forward.1} parent=0 // pred_fallthru
    _
  // Predicated region
  $region10: #{lstm_small_forward.1} parent=0 // pred_check
    _
  $region11: #{lstm_small_forward.1} parent=0 // pred_check_branch
    %18 = sbr.rel (0) target = $region13
  $region12: #{lstm_small_forward.1} parent=0 // pred_region
    _
  $region13: #{lstm_small_forward.1} parent=0 // pred_fallthru
    _
  // Predicated region
  $region14: #{lstm_small_forward.1} parent=0 // pred_check
    _
  $region15: #{lstm_small_forward.1} parent=0 // pred_check_branch
    %20 = sbr.rel (0) target = $region17
  $region16: #{lstm_small_forward.1} parent=0 // pred_region
    _
  $region17: #{lstm_small_forward.1} parent=0 // pred_fallthru
    _
  // Predicated region
  $region18: #{lstm_small_forward.1} parent=0 // pred_check
    _
  $region19: #{lstm_small_forward.1} parent=0 // pred_check_branch
    %22 = sbr.rel (0) target = $region21
  $region20: #{lstm_small_forward.1} parent=0 // pred_region
    _
  $region21: #{lstm_small_forward.1} parent=0 // pred_fallthru
    _
  // Predicated region
  $region22: #{lstm_small_forward.1} parent=0 // pred_check
    _
  $region23: #{lstm_small_forward.1} parent=0 // pred_check_branch
    %24 = sbr.rel (0) target = $region25
  $region24: #{lstm_small_forward.1} parent=0 // pred_region
    _
  $region25: #{lstm_small_forward.1} parent=0 // pred_fallthru
    _
  // Predicated region
  $region26: #{lstm_small_forward.1} parent=0 // pred_check
    _
  $region27: #{lstm_small_forward.1} parent=0 // pred_check_branch
    %26 = sbr.rel (0) target = $region29
  $region28: #{lstm_small_forward.1} parent=0 // pred_region
    _
  $region29: #{lstm_small_forward.1} parent=0 // pred_fallthru
    _
  // Predicated region
  $region30: #{lstm_small_forward.1} parent=0 // pred_check
    _
  $region31: #{lstm_small_forward.1} parent=0 // pred_check_branch
    %28 = sbr.rel (0) target = $region33
  $region32: #{lstm_small_forward.1} parent=0 // pred_region
    _
  $region33: #{lstm_small_forward.1} parent=0 // pred_fallthru
    _
  %v29 = vld [vmem:[%s0] sm:$0xff]
  %v30 = vld [vmem:[%s0 + $0x8] sm:$0xff]
  %v31 = vld [vmem:[%s0 + $0x10] sm:$0xff]
  %v32 = vld [vmem:[%s0 + $0x18] sm:$0xff]
  %v33 = vld [vmem:[%s0 + $0x20] sm:$0xff]
  %v34 = vld [vmem:[%s0 + $0x28] sm:$0xff]
  %v35 = vld [vmem:[%s0 + $0x30] sm:$0xff]
  %v36 = vld [vmem:[%s0 + $0x38] sm:$0xff]
  %v37 = vld [vmem:[%s1] sm:$0xff]
  %v38 = vld [vmem:[%s2] sm:$0xff]
  %v39 = vld [vmem:[%s2 + $0x8] sm:$0xff]
  %v40 = vld [vmem:[%s2 + $0x10] sm:$0xff]
  %v41 = vld [vmem:[%s2 + $0x18] sm:$0xff]
  %v42 = vld [vmem:[%s3] sm:$0x1]
  %v44 = vlaneseq
  %v45 = vshrl.u32 %v44, 7
  %v46 = vsub.s32 0, %v45
  %v47 = vrot.slane %v42, %v46
  %vm49 = vcmask 64512
  %v51 = vsel %vm49, %v29, 0
  %v54 = vsel %vm49, %v30, 0
  %v57 = vsel %vm49, %v31, 0
  %v60 = vsel %vm49, %v32, 0
  %v63 = vsel %vm49, %v33, 0
  %v66 = vsel %vm49, %v34, 0
  %v69 = vsel %vm49, %v35, 0
  %v72 = vsel %vm49, %v36, 0
  %74 = vmatprep.subr.mxu0 0.0
  %75 = vmatpush1.msra.mxu0 %v37
  %76 = vmatprep.subr.mxu0 0.0
  %77 = vmatpush1.msra.mxu0 0.0
  %78 = vmatprep.subr.mxu0 0.0
  %79 = vmatpush1.msra.mxu0 0.0
  %80 = vmatprep.subr.mxu0 0.0
  %81 = vmatpush1.msra.mxu0 0.0
  %82 = vmatprep.subr.mxu0 0.0
  %83 = vmatpush1.msra.mxu0 0.0
  %84 = vmatprep.subr.mxu0 0.0
  %85 = vmatpush1.msra.mxu0 0.0
  %86 = vmatprep.subr.mxu0 0.0
  %87 = vmatpush1.msra.mxu0 0.0
  %88 = vmatprep.subr.mxu0 0.0
  %89 = vmatpush1.msra.mxu0 0.0
  %90 = vmatprep.subr.mxu0 0.0
  %91 = vmatpush1.msra.mxu0 0.0
  %92 = vmatprep.subr.mxu0 0.0
  %93 = vmatpush1.msra.mxu0 0.0
  %94 = vmatprep.subr.mxu0 0.0
  %95 = vmatpush1.msra.mxu0 0.0
  %96 = vmatprep.subr.mxu0 0.0
  %97 = vmatpush1.msra.mxu0 0.0
  %98 = vmatprep.subr.mxu0 0.0
  %99 = vmatpush1.msra.mxu0 0.0
  %100 = vmatprep.subr.mxu0 0.0
  %101 = vmatpush1.msra.mxu0 0.0
  %102 = vmatprep.subr.mxu0 0.0
  %103 = vmatpush1.msra.mxu0 0.0
  %104 = vmatprep.subr.mxu0 0.0
  %105 = vmatpush1.msra.mxu0 0.0
  %106 = vmatprep.subr.mxu0 0.0
  %107 = vmatpush1.msra.mxu0 0.0
  %108 = vmatprep.subr.mxu0 0.0
  %109 = vmatpush1.msra.mxu0 0.0
  %110 = vmatprep.subr.mxu0 0.0
  %111 = vmatpush1.msra.mxu0 0.0
  %112 = vmatprep.subr.mxu0 0.0
  %113 = vmatpush1.msra.mxu0 0.0
  %114 = vmatprep.subr.mxu0 0.0
  %115 = vmatpush1.msra.mxu0 0.0
  %116 = vmatprep.subr.mxu0 0.0
  %117 = vmatpush1.msra.mxu0 0.0
  %118 = vmatprep.subr.mxu0 0.0
  %119 = vmatpush1.msra.mxu0 0.0
  %120 = vmatprep.subr.mxu0 0.0
  %121 = vmatpush1.msra.mxu0 0.0
  %122 = vmatprep.subr.mxu0 0.0
  %123 = vmatpush1.msra.mxu0 0.0
  %124 = vmatprep.subr.mxu0 0.0
  %125 = vmatpush1.msra.mxu0 0.0
  %126 = vmatprep.subr.mxu0 0.0
  %127 = vmatpush1.msra.mxu0 0.0
  %128 = vmatprep.subr.mxu0 0.0
  %129 = vmatpush1.msra.mxu0 0.0
  %130 = vmatprep.subr.mxu0 0.0
  %131 = vmatpush1.msra.mxu0 0.0
  %132 = vmatprep.subr.mxu0 0.0
  %133 = vmatpush1.msra.mxu0 0.0
  %134 = vmatprep.subr.mxu0 0.0
  %135 = vmatpush1.msra.mxu0 0.0
  %136 = vmatprep.subr.mxu0 0.0
  %137 = vmatpush1.msra.mxu0 0.0
  %138 = vmatprep.mubr.f32.mxu0 0.0
  %139 = vmatmul.mubr.f32.gmra.mrb[0].mxu0 %v51
  %v140 = vpop.f32.mrb[0].mxu0
  %v141 = vadd.f32 %v47, %v140
  %v142 = vpop.f32.mrb[0].mxu0
  %143 = vmatprep.mubr.f32.mxu0 0.0
  %144 = vmatmul.mubr.f32.gmra.mrb[0].mxu0 %v54
  %v145 = vpop.f32.mrb[0].mxu0
  %v146 = vadd.f32 %v47, %v145
  %v147 = vpop.f32.mrb[0].mxu0
  %148 = vmatprep.mubr.f32.mxu0 0.0
  %149 = vmatmul.mubr.f32.gmra.mrb[0].mxu0 %v57
  %v150 = vpop.f32.mrb[0].mxu0
  %v151 = vadd.f32 %v47, %v150
  %v152 = vpop.f32.mrb[0].mxu0
  %153 = vmatprep.mubr.f32.mxu0 0.0
  %154 = vmatmul.mubr.f32.gmra.mrb[0].mxu0 %v60
  %v155 = vpop.f32.mrb[0].mxu0
  %v156 = vadd.f32 %v47, %v155
  %v157 = vpop.f32.mrb[0].mxu0
  %158 = vmatprep.mubr.f32.mxu0 0.0
  %159 = vmatmul.mubr.f32.gmra.mrb[0].mxu0 %v63
  %v160 = vpop.f32.mrb[0].mxu0
  %v161 = vadd.f32 %v47, %v160
  %v162 = vpop.f32.mrb[0].mxu0
  %163 = vmatprep.mubr.f32.mxu0 0.0
  %164 = vmatmul.mubr.f32.gmra.mrb[0].mxu0 %v66
  %v165 = vpop.f32.mrb[0].mxu0
  %v166 = vadd.f32 %v47, %v165
  %v167 = vpop.f32.mrb[0].mxu0
  %168 = vmatprep.mubr.f32.mxu0 0.0
  %169 = vmatmul.mubr.f32.gmra.mrb[0].mxu0 %v69
  %v170 = vpop.f32.mrb[0].mxu0
  %v171 = vadd.f32 %v47, %v170
  %v172 = vpop.f32.mrb[0].mxu0
  %173 = vmatprep.mubr.f32.mxu0 0.0
  %174 = vmatmul.mubr.f32.gmra.mrb[0].mxu0 %v72
  %v175 = vpop.f32.mrb[0].mxu0
  %v176 = vadd.f32 %v47, %v175
  %v177 = vpop.f32.mrb[0].mxu0
  %178 = vdwg.mxu0
  %vm179 = vcmask 261120
  %v181 = vsel %vm179, 0.0, 0
  %183 = vmatprep.subr.mxu0 0.0
  %184 = vmatpush1.msra.mxu0 %v38
  %185 = vmatprep.subr.mxu0 0.0
  %186 = vmatpush1.msra.mxu0 %v39
  %187 = vmatprep.subr.mxu0 0.0
  %188 = vmatpush1.msra.mxu0 %v40
  %189 = vmatprep.subr.mxu0 0.0
  %190 = vmatpush1.msra.mxu0 %v41
  %191 = vmatprep.subr.mxu0 0.0
  %192 = vmatpush1.msra.mxu0 0.0
  %193 = vmatprep.subr.mxu0 0.0
  %194 = vmatpush1.msra.mxu0 0.0
  %195 = vmatprep.subr.mxu0 0.0
  %196 = vmatpush1.msra.mxu0 0.0
  %197 = vmatprep.subr.mxu0 0.0
  %198 = vmatpush1.msra.mxu0 0.0
  %199 = vmatprep.subr.mxu0 0.0
  %200 = vmatpush1.msra.mxu0 0.0
  %201 = vmatprep.subr.mxu0 0.0
  %202 = vmatpush1.msra.mxu0 0.0
  %203 = vmatprep.subr.mxu0 0.0
  %204 = vmatpush1.msra.mxu0 0.0
  %205 = vmatprep.subr.mxu0 0.0
  %206 = vmatpush1.msra.mxu0 0.0
  %207 = vmatprep.subr.mxu0 0.0
  %208 = vmatpush1.msra.mxu0 0.0
  %209 = vmatprep.subr.mxu0 0.0
  %210 = vmatpush1.msra.mxu0 0.0
  %211 = vmatprep.subr.mxu0 0.0
  %212 = vmatpush1.msra.mxu0 0.0
  %213 = vmatprep.subr.mxu0 0.0
  %214 = vmatpush1.msra.mxu0 0.0
  %215 = vmatprep.subr.mxu0 0.0
  %216 = vmatpush1.msra.mxu0 0.0
  %217 = vmatprep.subr.mxu0 0.0
  %218 = vmatpush1.msra.mxu0 0.0
  %219 = vmatprep.subr.mxu0 0.0
  %220 = vmatpush1.msra.mxu0 0.0
  %221 = vmatprep.subr.mxu0 0.0
  %222 = vmatpush1.msra.mxu0 0.0
  %223 = vmatprep.subr.mxu0 0.0
  %224 = vmatpush1.msra.mxu0 0.0
  %225 = vmatprep.subr.mxu0 0.0
  %226 = vmatpush1.msra.mxu0 0.0
  %227 = vmatprep.subr.mxu0 0.0
  %228 = vmatpush1.msra.mxu0 0.0
  %229 = vmatprep.subr.mxu0 0.0
  %230 = vmatpush1.msra.mxu0 0.0
  %231 = vmatprep.subr.mxu0 0.0
  %232 = vmatpush1.msra.mxu0 0.0
  %233 = vmatprep.subr.mxu0 0.0
  %234 = vmatpush1.msra.mxu0 0.0
  %235 = vmatprep.subr.mxu0 0.0
  %236 = vmatpush1.msra.mxu0 0.0
  %237 = vmatprep.subr.mxu0 0.0
  %238 = vmatpush1.msra.mxu0 0.0
  %239 = vmatprep.subr.mxu0 0.0
  %240 = vmatpush1.msra.mxu0 0.0
  %241 = vmatprep.subr.mxu0 0.0
  %242 = vmatpush1.msra.mxu0 0.0
  %243 = vmatprep.subr.mxu0 0.0
  %244 = vmatpush1.msra.mxu0 0.0
  %245 = vmatprep.subr.mxu0 0.0
  %246 = vmatpush1.msra.mxu0 0.0
  %247 = vmatprep.mubr.f32.mxu0 0.0
  %248 = vmatmul.mubr.f32.gmra.mrb[0].mxu0 %v181
  %v249 = vpop.f32.mrb[0].mxu0
  %v250 = vadd.f32 0.0, %v249
  %v251 = vpop.f32.mrb[0].mxu0
  %252 = vdwg.mxu0
  %v253 = vadd.f32 %v141, %v250
  %v254 = vxor.u32 %v253, 2147483648
  %v255 = vmul.f32 %v254, 1.442695
  %v256 = vpow.pop %v255
  %v257 = vadd.f32 %v256, 1.0
  %v258 = vrcp.pop %v257
  %v259 = vmul.f32 1.0, %v258
  %v260 = vtanh.pop %v253
  %v261 = vmul.f32 %v259, 0.0
  %263 = vrot.lane.b32.xlu0 %v260, 64
  %v264 = vpop.permute.xlu0 %263
  %v266 = vmul.f32 %v259, %v264
  %268 = vrot.lane.b32.xlu0 %v266, 32
  %v269 = vpop.permute.xlu0 %268
  %v271 = vadd.f32 %v261, %v269
  %v272 = vtanh.pop %v271
  %274 = vrot.lane.b32.xlu0 %v272, 64
  %v275 = vpop.permute.xlu0 %274
  %v277 = vmul.f32 %v259, %v275
  %279 = vrot.lane.b32.xlu0 %v277, 32
  %v280 = vpop.permute.xlu0 %279
  %282 = vst.msk [vmem:[#allocation2] sm:$0xff] %vm179, %v280
  %v283 = vsel %vm179, %v280, 0
  %285 = vmatprep.subr.mxu0 0.0
  %286 = vmatpush1.msra.mxu0 %v38
  %287 = vmatprep.subr.mxu0 0.0
  %288 = vmatpush1.msra.mxu0 %v39
  %289 = vmatprep.subr.mxu0 0.0
  %290 = vmatpush1.msra.mxu0 %v40
  %291 = vmatprep.subr.mxu0 0.0
  %292 = vmatpush1.msra.mxu0 %v41
  %293 = vmatprep.subr.mxu0 0.0
  %294 = vmatpush1.msra.mxu0 0.0
  %295 = vmatprep.subr.mxu0 0.0
  %296 = vmatpush1.msra.mxu0 0.0
  %297 = vmatprep.subr.mxu0 0.0
  %298 = vmatpush1.msra.mxu0 0.0
  %299 = vmatprep.subr.mxu0 0.0
  %300 = vmatpush1.msra.mxu0 0.0
  %301 = vmatprep.subr.mxu0 0.0
  %302 = vmatpush1.msra.mxu0 0.0
  %303 = vmatprep.subr.mxu0 0.0
  %304 = vmatpush1.msra.mxu0 0.0
  %305 = vmatprep.subr.mxu0 0.0
  %306 = vmatpush1.msra.mxu0 0.0
  %307 = vmatprep.subr.mxu0 0.0
  %308 = vmatpush1.msra.mxu0 0.0
  %309 = vmatprep.subr.mxu0 0.0
  %310 = vmatpush1.msra.mxu0 0.0
  %311 = vmatprep.subr.mxu0 0.0
  %312 = vmatpush1.msra.mxu0 0.0
  %313 = vmatprep.subr.mxu0 0.0
  %314 = vmatpush1.msra.mxu0 0.0
  %315 = vmatprep.subr.mxu0 0.0
  %316 = vmatpush1.msra.mxu0 0.0
  %317 = vmatprep.subr.mxu0 0.0
  %318 = vmatpush1.msra.mxu0 0.0
  %319 = vmatprep.subr.mxu0 0.0
  %320 = vmatpush1.msra.mxu0 0.0
  %321 = vmatprep.subr.mxu0 0.0
  %322 = vmatpush1.msra.mxu0 0.0
  %323 = vmatprep.subr.mxu0 0.0
  %324 = vmatpush1.msra.mxu0 0.0
  %325 = vmatprep.subr.mxu0 0.0
  %326 = vmatpush1.msra.mxu0 0.0
  %327 = vmatprep.subr.mxu0 0.0
  %328 = vmatpush1.msra.mxu0 0.0
  %329 = vmatprep.subr.mxu0 0.0
  %330 = vmatpush1.msra.mxu0 0.0
  %331 = vmatprep.subr.mxu0 0.0
  %332 = vmatpush1.msra.mxu0 0.0
  %333 = vmatprep.subr.mxu0 0.0
  %334 = vmatpush1.msra.mxu0 0.0
  %335 = vmatprep.subr.mxu0 0.0
  %336 = vmatpush1.msra.mxu0 0.0
  %337 = vmatprep.subr.mxu0 0.0
  %338 = vmatpush1.msra.mxu0 0.0
  %339 = vmatprep.subr.mxu0 0.0
  %340 = vmatpush1.msra.mxu0 0.0
  %341 = vmatprep.subr.mxu0 0.0
  %342 = vmatpush1.msra.mxu0 0.0
  %343 = vmatprep.subr.mxu0 0.0
  %344 = vmatpush1.msra.mxu0 0.0
  %345 = vmatprep.subr.mxu0 0.0
  %346 = vmatpush1.msra.mxu0 0.0
  %347 = vmatprep.subr.mxu0 0.0
  %348 = vmatpush1.msra.mxu0 0.0
  %349 = vmatprep.mubr.f32.mxu0 0.0
  %350 = vmatmul.mubr.f32.gmra.mrb[0].mxu0 %v283
  %v351 = vpop.f32.mrb[0].mxu0
  %v352 = vadd.f32 0.0, %v351
  %v353 = vpop.f32.mrb[0].mxu0
  %354 = vdwg.mxu0
  %v355 = vadd.f32 %v146, %v352
  %v356 = vxor.u32 %v355, 2147483648
  %v357 = vmul.f32 %v356, 1.442695
  %v358 = vpow.pop %v357
  %v359 = vadd.f32 %v358, 1.0
  %v360 = vrcp.pop %v359
  %v361 = vmul.f32 1.0, %v360
  %v362 = vtanh.pop %v355
  %v363 = vmul.f32 %v361, %v271
  %365 = vrot.lane.b32.xlu0 %v362, 64
  %v366 = vpop.permute.xlu0 %365
  %v368 = vmul.f32 %v361, %v366
  %370 = vrot.lane.b32.xlu0 %v368, 32
  %v371 = vpop.permute.xlu0 %370
  %v373 = vadd.f32 %v363, %v371
  %v374 = vtanh.pop %v373
  %376 = vrot.lane.b32.xlu0 %v374, 64
  %v377 = vpop.permute.xlu0 %376
  %v379 = vmul.f32 %v361, %v377
  %381 = vrot.lane.b32.xlu0 %v379, 32
  %v382 = vpop.permute.xlu0 %381
  %384 = vst.msk [vmem:[#allocation2 + $0x8] sm:$0xff] %vm179, %v382
  %v385 = vsel %vm179, %v382, 0
  %387 = vmatprep.subr.mxu0 0.0
  %388 = vmatpush1.msra.mxu0 %v38
  %389 = vmatprep.subr.mxu0 0.0
  %390 = vmatpush1.msra.mxu0 %v39
  %391 = vmatprep.subr.mxu0 0.0
  %392 = vmatpush1.msra.mxu0 %v40
  %393 = vmatprep.subr.mxu0 0.0
  %394 = vmatpush1.msra.mxu0 %v41
  %395 = vmatprep.subr.mxu0 0.0
  %396 = vmatpush1.msra.mxu0 0.0
  %397 = vmatprep.subr.mxu0 0.0
  %398 = vmatpush1.msra.mxu0 0.0
  %399 = vmatprep.subr.mxu0 0.0
  %400 = vmatpush1.msra.mxu0 0.0
  %401 = vmatprep.subr.mxu0 0.0
  %402 = vmatpush1.msra.mxu0 0.0
  %403 = vmatprep.subr.mxu0 0.0
  %404 = vmatpush1.msra.mxu0 0.0
  %405 = vmatprep.subr.mxu0 0.0
  %406 = vmatpush1.msra.mxu0 0.0
  %407 = vmatprep.subr.mxu0 0.0
  %408 = vmatpush1.msra.mxu0 0.0
  %409 = vmatprep.subr.mxu0 0.0
  %410 = vmatpush1.msra.mxu0 0.0
  %411 = vmatprep.subr.mxu0 0.0
  %412 = vmatpush1.msra.mxu0 0.0
  %413 = vmatprep.subr.mxu0 0.0
  %414 = vmatpush1.msra.mxu0 0.0
  %415 = vmatprep.subr.mxu0 0.0
  %416 = vmatpush1.msra.mxu0 0.0
  %417 = vmatprep.subr.mxu0 0.0
  %418 = vmatpush1.msra.mxu0 0.0
  %419 = vmatprep.subr.mxu0 0.0
  %420 = vmatpush1.msra.mxu0 0.0
  %421 = vmatprep.subr.mxu0 0.0
  %422 = vmatpush1.msra.mxu0 0.0
  %423 = vmatprep.subr.mxu0 0.0
  %424 = vmatpush1.msra.mxu0 0.0
  %425 = vmatprep.subr.mxu0 0.0
  %426 = vmatpush1.msra.mxu0 0.0
  %427 = vmatprep.subr.mxu0 0.0
  %428 = vmatpush1.msra.mxu0 0.0
  %429 = vmatprep.subr.mxu0 0.0
  %430 = vmatpush1.msra.mxu0 0.0
  %431 = vmatprep.subr.mxu0 0.0
  %432 = vmatpush1.msra.mxu0 0.0
  %433 = vmatprep.subr.mxu0 0.0
  %434 = vmatpush1.msra.mxu0 0.0
  %435 = vmatprep.subr.mxu0 0.0
  %436 = vmatpush1.msra.mxu0 0.0
  %437 = vmatprep.subr.mxu0 0.0
  %438 = vmatpush1.msra.mxu0 0.0
  %439 = vmatprep.subr.mxu0 0.0
  %440 = vmatpush1.msra.mxu0 0.0
  %441 = vmatprep.subr.mxu0 0.0
  %442 = vmatpush1.msra.mxu0 0.0
  %443 = vmatprep.subr.mxu0 0.0
  %444 = vmatpush1.msra.mxu0 0.0
  %445 = vmatprep.subr.mxu0 0.0
  %446 = vmatpush1.msra.mxu0 0.0
  %447 = vmatprep.subr.mxu0 0.0
  %448 = vmatpush1.msra.mxu0 0.0
  %449 = vmatprep.subr.mxu0 0.0
  %450 = vmatpush1.msra.mxu0 0.0
  %451 = vmatprep.mubr.f32.mxu0 0.0
  %452 = vmatmul.mubr.f32.gmra.mrb[0].mxu0 %v385
  %v453 = vpop.f32.mrb[0].mxu0
  %v454 = vadd.f32 0.0, %v453
  %v455 = vpop.f32.mrb[0].mxu0
  %456 = vdwg.mxu0
  %v457 = vadd.f32 %v151, %v454
  %v458 = vxor.u32 %v457, 2147483648
  %v459 = vmul.f32 %v458, 1.442695
  %v460 = vpow.pop %v459
  %v461 = vadd.f32 %v460, 1.0
  %v462 = vrcp.pop %v461
  %v463 = vmul.f32 1.0, %v462
  %v464 = vtanh.pop %v457
  %v465 = vmul.f32 %v463, %v373
  %467 = vrot.lane.b32.xlu0 %v464, 64
  %v468 = vpop.permute.xlu0 %467
  %v470 = vmul.f32 %v463, %v468
  %472 = vrot.lane.b32.xlu0 %v470, 32
  %v473 = vpop.permute.xlu0 %472
  %v475 = vadd.f32 %v465, %v473
  %v476 = vtanh.pop %v475
  %478 = vrot.lane.b32.xlu0 %v476, 64
  %v479 = vpop.permute.xlu0 %478
  %v481 = vmul.f32 %v463, %v479
  %483 = vrot.lane.b32.xlu0 %v481, 32
  %v484 = vpop.permute.xlu0 %483
  %486 = vst.msk [vmem:[#allocation2 + $0x10] sm:$0xff] %vm179, %v484
  %v487 = vsel %vm179, %v484, 0
  %489 = vmatprep.subr.mxu0 0.0
  %490 = vmatpush1.msra.mxu0 %v38
  %491 = vmatprep.subr.mxu0 0.0
  %492 = vmatpush1.msra.mxu0 %v39
  %493 = vmatprep.subr.mxu0 0.0
  %494 = vmatpush1.msra.mxu0 %v40
  %495 = vmatprep.subr.mxu0 0.0
  %496 = vmatpush1.msra.mxu0 %v41
  %497 = vmatprep.subr.mxu0 0.0
  %498 = vmatpush1.msra.mxu0 0.0
  %499 = vmatprep.subr.mxu0 0.0
  %500 = vmatpush1.msra.mxu0 0.0
  %501 = vmatprep.subr.mxu0 0.0
  %502 = vmatpush1.msra.mxu0 0.0
  %503 = vmatprep.subr.mxu0 0.0
  %504 = vmatpush1.msra.mxu0 0.0
  %505 = vmatprep.subr.mxu0 0.0
  %506 = vmatpush1.msra.mxu0 0.0
  %507 = vmatprep.subr.mxu0 0.0
  %508 = vmatpush1.msra.mxu0 0.0
  %509 = vmatprep.subr.mxu0 0.0
  %510 = vmatpush1.msra.mxu0 0.0
  %511 = vmatprep.subr.mxu0 0.0
  %512 = vmatpush1.msra.mxu0 0.0
  %513 = vmatprep.subr.mxu0 0.0
  %514 = vmatpush1.msra.mxu0 0.0
  %515 = vmatprep.subr.mxu0 0.0
  %516 = vmatpush1.msra.mxu0 0.0
  %517 = vmatprep.subr.mxu0 0.0
  %518 = vmatpush1.msra.mxu0 0.0
  %519 = vmatprep.subr.mxu0 0.0
  %520 = vmatpush1.msra.mxu0 0.0
  %521 = vmatprep.subr.mxu0 0.0
  %522 = vmatpush1.msra.mxu0 0.0
  %523 = vmatprep.subr.mxu0 0.0
  %524 = vmatpush1.msra.mxu0 0.0
  %525 = vmatprep.subr.mxu0 0.0
  %526 = vmatpush1.msra.mxu0 0.0
  %527 = vmatprep.subr.mxu0 0.0
  %528 = vmatpush1.msra.mxu0 0.0
  %529 = vmatprep.subr.mxu0 0.0
  %530 = vmatpush1.msra.mxu0 0.0
  %531 = vmatprep.subr.mxu0 0.0
  %532 = vmatpush1.msra.mxu0 0.0
  %533 = vmatprep.subr.mxu0 0.0
  %534 = vmatpush1.msra.mxu0 0.0
  %535 = vmatprep.subr.mxu0 0.0
  %536 = vmatpush1.msra.mxu0 0.0
  %537 = vmatprep.subr.mxu0 0.0
  %538 = vmatpush1.msra.mxu0 0.0
  %539 = vmatprep.subr.mxu0 0.0
  %540 = vmatpush1.msra.mxu0 0.0
  %541 = vmatprep.subr.mxu0 0.0
  %542 = vmatpush1.msra.mxu0 0.0
  %543 = vmatprep.subr.mxu0 0.0
  %544 = vmatpush1.msra.mxu0 0.0
  %545 = vmatprep.subr.mxu0 0.0
  %546 = vmatpush1.msra.mxu0 0.0
  %547 = vmatprep.subr.mxu0 0.0
  %548 = vmatpush1.msra.mxu0 0.0
  %549 = vmatprep.subr.mxu0 0.0
  %550 = vmatpush1.msra.mxu0 0.0
  %551 = vmatprep.subr.mxu0 0.0
  %552 = vmatpush1.msra.mxu0 0.0
  %553 = vmatprep.mubr.f32.mxu0 0.0
  %554 = vmatmul.mubr.f32.gmra.mrb[0].mxu0 %v487
  %v555 = vpop.f32.mrb[0].mxu0
  %v556 = vadd.f32 0.0, %v555
  %v557 = vpop.f32.mrb[0].mxu0
  %558 = vdwg.mxu0
  %v559 = vadd.f32 %v156, %v556
  %v560 = vxor.u32 %v559, 2147483648
  %v561 = vmul.f32 %v560, 1.442695
  %v562 = vpow.pop %v561
  %v563 = vadd.f32 %v562, 1.0
  %v564 = vrcp.pop %v563
  %v565 = vmul.f32 1.0, %v564
  %v566 = vtanh.pop %v559
  %v567 = vmul.f32 %v565, %v475
  %569 = vrot.lane.b32.xlu0 %v566, 64
  %v570 = vpop.permute.xlu0 %569
  %v572 = vmul.f32 %v565, %v570
  %574 = vrot.lane.b32.xlu0 %v572, 32
  %v575 = vpop.permute.xlu0 %574
  %v577 = vadd.f32 %v567, %v575
  %v578 = vtanh.pop %v577
  %580 = vrot.lane.b32.xlu0 %v578, 64
  %v581 = vpop.permute.xlu0 %580
  %v583 = vmul.f32 %v565, %v581
  %585 = vrot.lane.b32.xlu0 %v583, 32
  %v586 = vpop.permute.xlu0 %585
  %588 = vst.msk [vmem:[#allocation2 + $0x18] sm:$0xff] %vm179, %v586
  %v589 = vsel %vm179, %v586, 0
  %591 = vmatprep.subr.mxu0 0.0
  %592 = vmatpush1.msra.mxu0 %v38
  %593 = vmatprep.subr.mxu0 0.0
  %594 = vmatpush1.msra.mxu0 %v39
  %595 = vmatprep.subr.mxu0 0.0
  %596 = vmatpush1.msra.mxu0 %v40
  %597 = vmatprep.subr.mxu0 0.0
  %598 = vmatpush1.msra.mxu0 %v41
  %599 = vmatprep.subr.mxu0 0.0
  %600 = vmatpush1.msra.mxu0 0.0
  %601 = vmatprep.subr.mxu0 0.0
  %602 = vmatpush1.msra.mxu0 0.0
  %603 = vmatprep.subr.mxu0 0.0
  %604 = vmatpush1.msra.mxu0 0.0
  %605 = vmatprep.subr.mxu0 0.0
  %606 = vmatpush1.msra.mxu0 0.0
  %607 = vmatprep.subr.mxu0 0.0
  %608 = vmatpush1.msra.mxu0 0.0
  %609 = vmatprep.subr.mxu0 0.0
  %610 = vmatpush1.msra.mxu0 0.0
  %611 = vmatprep.subr.mxu0 0.0
  %612 = vmatpush1.msra.mxu0 0.0
  %613 = vmatprep.subr.mxu0 0.0
  %614 = vmatpush1.msra.mxu0 0.0
  %615 = vmatprep.subr.mxu0 0.0
  %616 = vmatpush1.msra.mxu0 0.0
  %617 = vmatprep.subr.mxu0 0.0
  %618 = vmatpush1.msra.mxu0 0.0
  %619 = vmatprep.subr.mxu0 0.0
  %620 = vmatpush1.msra.mxu0 0.0
  %621 = vmatprep.subr.mxu0 0.0
  %622 = vmatpush1.msra.mxu0 0.0
  %623 = vmatprep.subr.mxu0 0.0
  %624 = vmatpush1.msra.mxu0 0.0
  %625 = vmatprep.subr.mxu0 0.0
  %626 = vmatpush1.msra.mxu0 0.0
  %627 = vmatprep.subr.mxu0 0.0
  %628 = vmatpush1.msra.mxu0 0.0
  %629 = vmatprep.subr.mxu0 0.0
  %630 = vmatpush1.msra.mxu0 0.0
  %631 = vmatprep.subr.mxu0 0.0
  %632 = vmatpush1.msra.mxu0 0.0
  %633 = vmatprep.subr.mxu0 0.0
  %634 = vmatpush1.msra.mxu0 0.0
  %635 = vmatprep.subr.mxu0 0.0
  %636 = vmatpush1.msra.mxu0 0.0
  %637 = vmatprep.subr.mxu0 0.0
  %638 = vmatpush1.msra.mxu0 0.0
  %639 = vmatprep.subr.mxu0 0.0
  %640 = vmatpush1.msra.mxu0 0.0
  %641 = vmatprep.subr.mxu0 0.0
  %642 = vmatpush1.msra.mxu0 0.0
  %643 = vmatprep.subr.mxu0 0.0
  %644 = vmatpush1.msra.mxu0 0.0
  %645 = vmatprep.subr.mxu0 0.0
  %646 = vmatpush1.msra.mxu0 0.0
  %647 = vmatprep.subr.mxu0 0.0
  %648 = vmatpush1.msra.mxu0 0.0
  %649 = vmatprep.subr.mxu0 0.0
  %650 = vmatpush1.msra.mxu0 0.0
  %651 = vmatprep.subr.mxu0 0.0
  %652 = vmatpush1.msra.mxu0 0.0
  %653 = vmatprep.subr.mxu0 0.0
  %654 = vmatpush1.msra.mxu0 0.0
  %655 = vmatprep.mubr.f32.mxu0 0.0
  %656 = vmatmul.mubr.f32.gmra.mrb[0].mxu0 %v589
  %v657 = vpop.f32.mrb[0].mxu0
  %v658 = vadd.f32 0.0, %v657
  %v659 = vpop.f32.mrb[0].mxu0
  %660 = vdwg.mxu0
  %v661 = vadd.f32 %v161, %v658
  %v662 = vxor.u32 %v661, 2147483648
  %v663 = vmul.f32 %v662, 1.442695
  %v664 = vpow.pop %v663
  %v665 = vadd.f32 %v664, 1.0
  %v666 = vrcp.pop %v665
  %v667 = vmul.f32 1.0, %v666
  %v668 = vtanh.pop %v661
  %v669 = vmul.f32 %v667, %v577
  %671 = vrot.lane.b32.xlu0 %v668, 64
  %v672 = vpop.permute.xlu0 %671
  %v674 = vmul.f32 %v667, %v672
  %676 = vrot.lane.b32.xlu0 %v674, 32
  %v677 = vpop.permute.xlu0 %676
  %v679 = vadd.f32 %v669, %v677
  %v680 = vtanh.pop %v679
  %682 = vrot.lane.b32.xlu0 %v680, 64
  %v683 = vpop.permute.xlu0 %682
  %v685 = vmul.f32 %v667, %v683
  %687 = vrot.lane.b32.xlu0 %v685, 32
  %v688 = vpop.permute.xlu0 %687
  %690 = vst.msk [vmem:[#allocation2 + $0x20] sm:$0xff] %vm179, %v688
  %v691 = vsel %vm179, %v688, 0
  %693 = vmatprep.subr.mxu0 0.0
  %694 = vmatpush1.msra.mxu0 %v38
  %695 = vmatprep.subr.mxu0 0.0
  %696 = vmatpush1.msra.mxu0 %v39
  %697 = vmatprep.subr.mxu0 0.0
  %698 = vmatpush1.msra.mxu0 %v40
  %699 = vmatprep.subr.mxu0 0.0
  %700 = vmatpush1.msra.mxu0 %v41
  %701 = vmatprep.subr.mxu0 0.0
  %702 = vmatpush1.msra.mxu0 0.0
  %703 = vmatprep.subr.mxu0 0.0
  %704 = vmatpush1.msra.mxu0 0.0
  %705 = vmatprep.subr.mxu0 0.0
  %706 = vmatpush1.msra.mxu0 0.0
  %707 = vmatprep.subr.mxu0 0.0
  %708 = vmatpush1.msra.mxu0 0.0
  %709 = vmatprep.subr.mxu0 0.0
  %710 = vmatpush1.msra.mxu0 0.0
  %711 = vmatprep.subr.mxu0 0.0
  %712 = vmatpush1.msra.mxu0 0.0
  %713 = vmatprep.subr.mxu0 0.0
  %714 = vmatpush1.msra.mxu0 0.0
  %715 = vmatprep.subr.mxu0 0.0
  %716 = vmatpush1.msra.mxu0 0.0
  %717 = vmatprep.subr.mxu0 0.0
  %718 = vmatpush1.msra.mxu0 0.0
  %719 = vmatprep.subr.mxu0 0.0
  %720 = vmatpush1.msra.mxu0 0.0
  %721 = vmatprep.subr.mxu0 0.0
  %722 = vmatpush1.msra.mxu0 0.0
  %723 = vmatprep.subr.mxu0 0.0
  %724 = vmatpush1.msra.mxu0 0.0
  %725 = vmatprep.subr.mxu0 0.0
  %726 = vmatpush1.msra.mxu0 0.0
  %727 = vmatprep.subr.mxu0 0.0
  %728 = vmatpush1.msra.mxu0 0.0
  %729 = vmatprep.subr.mxu0 0.0
  %730 = vmatpush1.msra.mxu0 0.0
  %731 = vmatprep.subr.mxu0 0.0
  %732 = vmatpush1.msra.mxu0 0.0
  %733 = vmatprep.subr.mxu0 0.0
  %734 = vmatpush1.msra.mxu0 0.0
  %735 = vmatprep.subr.mxu0 0.0
  %736 = vmatpush1.msra.mxu0 0.0
  %737 = vmatprep.subr.mxu0 0.0
  %738 = vmatpush1.msra.mxu0 0.0
  %739 = vmatprep.subr.mxu0 0.0
  %740 = vmatpush1.msra.mxu0 0.0
  %741 = vmatprep.subr.mxu0 0.0
  %742 = vmatpush1.msra.mxu0 0.0
  %743 = vmatprep.subr.mxu0 0.0
  %744 = vmatpush1.msra.mxu0 0.0
  %745 = vmatprep.subr.mxu0 0.0
  %746 = vmatpush1.msra.mxu0 0.0
  %747 = vmatprep.subr.mxu0 0.0
  %748 = vmatpush1.msra.mxu0 0.0
  %749 = vmatprep.subr.mxu0 0.0
  %750 = vmatpush1.msra.mxu0 0.0
  %751 = vmatprep.subr.mxu0 0.0
  %752 = vmatpush1.msra.mxu0 0.0
  %753 = vmatprep.subr.mxu0 0.0
  %754 = vmatpush1.msra.mxu0 0.0
  %755 = vmatprep.subr.mxu0 0.0
  %756 = vmatpush1.msra.mxu0 0.0
  %757 = vmatprep.mubr.f32.mxu0 0.0
  %758 = vmatmul.mubr.f32.gmra.mrb[0].mxu0 %v691
  %v759 = vpop.f32.mrb[0].mxu0
  %v760 = vadd.f32 0.0, %v759
  %v761 = vpop.f32.mrb[0].mxu0
  %762 = vdwg.mxu0
  %v763 = vadd.f32 %v166, %v760
  %v764 = vxor.u32 %v763, 2147483648
  %v765 = vmul.f32 %v764, 1.442695
  %v766 = vpow.pop %v765
  %v767 = vadd.f32 %v766, 1.0
  %v768 = vrcp.pop %v767
  %v769 = vmul.f32 1.0, %v768
  %v770 = vtanh.pop %v763
  %v771 = vmul.f32 %v769, %v679
  %773 = vrot.lane.b32.xlu0 %v770, 64
  %v774 = vpop.permute.xlu0 %773
  %v776 = vmul.f32 %v769, %v774
  %778 = vrot.lane.b32.xlu0 %v776, 32
  %v779 = vpop.permute.xlu0 %778
  %v781 = vadd.f32 %v771, %v779
  %v782 = vtanh.pop %v781
  %784 = vrot.lane.b32.xlu0 %v782, 64
  %v785 = vpop.permute.xlu0 %784
  %v787 = vmul.f32 %v769, %v785
  %789 = vrot.lane.b32.xlu0 %v787, 32
  %v790 = vpop.permute.xlu0 %789
  %792 = vst.msk [vmem:[#allocation2 + $0x28] sm:$0xff] %vm179, %v790
  %v793 = vsel %vm179, %v790, 0
  %795 = vmatprep.subr.mxu0 0.0
  %796 = vmatpush1.msra.mxu0 %v38
  %797 = vmatprep.subr.mxu0 0.0
  %798 = vmatpush1.msra.mxu0 %v39
  %799 = vmatprep.subr.mxu0 0.0
  %800 = vmatpush1.msra.mxu0 %v40
  %801 = vmatprep.subr.mxu0 0.0
  %802 = vmatpush1.msra.mxu0 %v41
  %803 = vmatprep.subr.mxu0 0.0
  %804 = vmatpush1.msra.mxu0 0.0
  %805 = vmatprep.subr.mxu0 0.0
  %806 = vmatpush1.msra.mxu0 0.0
  %807 = vmatprep.subr.mxu0 0.0
  %808 = vmatpush1.msra.mxu0 0.0
  %809 = vmatprep.subr.mxu0 0.0
  %810 = vmatpush1.msra.mxu0 0.0
  %811 = vmatprep.subr.mxu0 0.0
  %812 = vmatpush1.msra.mxu0 0.0
  %813 = vmatprep.subr.mxu0 0.0
  %814 = vmatpush1.msra.mxu0 0.0
  %815 = vmatprep.subr.mxu0 0.0
  %816 = vmatpush1.msra.mxu0 0.0
  %817 = vmatprep.subr.mxu0 0.0
  %818 = vmatpush1.msra.mxu0 0.0
  %819 = vmatprep.subr.mxu0 0.0
  %820 = vmatpush1.msra.mxu0 0.0
  %821 = vmatprep.subr.mxu0 0.0
  %822 = vmatpush1.msra.mxu0 0.0
  %823 = vmatprep.subr.mxu0 0.0
  %824 = vmatpush1.msra.mxu0 0.0
  %825 = vmatprep.subr.mxu0 0.0
  %826 = vmatpush1.msra.mxu0 0.0
  %827 = vmatprep.subr.mxu0 0.0
  %828 = vmatpush1.msra.mxu0 0.0
  %829 = vmatprep.subr.mxu0 0.0
  %830 = vmatpush1.msra.mxu0 0.0
  %831 = vmatprep.subr.mxu0 0.0
  %832 = vmatpush1.msra.mxu0 0.0
  %833 = vmatprep.subr.mxu0 0.0
  %834 = vmatpush1.msra.mxu0 0.0
  %835 = vmatprep.subr.mxu0 0.0
  %836 = vmatpush1.msra.mxu0 0.0
  %837 = vmatprep.subr.mxu0 0.0
  %838 = vmatpush1.msra.mxu0 0.0
  %839 = vmatprep.subr.mxu0 0.0
  %840 = vmatpush1.msra.mxu0 0.0
  %841 = vmatprep.subr.mxu0 0.0
  %842 = vmatpush1.msra.mxu0 0.0
  %843 = vmatprep.subr.mxu0 0.0
  %844 = vmatpush1.msra.mxu0 0.0
  %845 = vmatprep.subr.mxu0 0.0
  %846 = vmatpush1.msra.mxu0 0.0
  %847 = vmatprep.subr.mxu0 0.0
  %848 = vmatpush1.msra.mxu0 0.0
  %849 = vmatprep.subr.mxu0 0.0
  %850 = vmatpush1.msra.mxu0 0.0
  %851 = vmatprep.subr.mxu0 0.0
  %852 = vmatpush1.msra.mxu0 0.0
  %853 = vmatprep.subr.mxu0 0.0
  %854 = vmatpush1.msra.mxu0 0.0
  %855 = vmatprep.subr.mxu0 0.0
  %856 = vmatpush1.msra.mxu0 0.0
  %857 = vmatprep.subr.mxu0 0.0
  %858 = vmatpush1.msra.mxu0 0.0
  %859 = vmatprep.mubr.f32.mxu0 0.0
  %860 = vmatmul.mubr.f32.gmra.mrb[0].mxu0 %v793
  %v861 = vpop.f32.mrb[0].mxu0
  %v862 = vadd.f32 0.0, %v861
  %v863 = vpop.f32.mrb[0].mxu0
  %864 = vdwg.mxu0
  %v865 = vadd.f32 %v171, %v862
  %v866 = vxor.u32 %v865, 2147483648
  %v867 = vmul.f32 %v866, 1.442695
  %v868 = vpow.pop %v867
  %v869 = vadd.f32 %v868, 1.0
  %v870 = vrcp.pop %v869
  %v871 = vmul.f32 1.0, %v870
  %v872 = vtanh.pop %v865
  %v873 = vmul.f32 %v871, %v781
  %875 = vrot.lane.b32.xlu0 %v872, 64
  %v876 = vpop.permute.xlu0 %875
  %v878 = vmul.f32 %v871, %v876
  %880 = vrot.lane.b32.xlu0 %v878, 32
  %v881 = vpop.permute.xlu0 %880
  %v883 = vadd.f32 %v873, %v881
  %v884 = vtanh.pop %v883
  %886 = vrot.lane.b32.xlu0 %v884, 64
  %v887 = vpop.permute.xlu0 %886
  %v889 = vmul.f32 %v871, %v887
  %891 = vrot.lane.b32.xlu0 %v889, 32
  %v892 = vpop.permute.xlu0 %891
  %894 = vst.msk [vmem:[#allocation2 + $0x30] sm:$0xff] %vm179, %v892
  %v895 = vsel %vm179, %v892, 0
  %897 = vmatprep.subr.mxu0 0.0
  %898 = vmatpush1.msra.mxu0 %v38
  %899 = vmatprep.subr.mxu0 0.0
  %900 = vmatpush1.msra.mxu0 %v39
  %901 = vmatprep.subr.mxu0 0.0
  %902 = vmatpush1.msra.mxu0 %v40
  %903 = vmatprep.subr.mxu0 0.0
  %904 = vmatpush1.msra.mxu0 %v41
  %905 = vmatprep.subr.mxu0 0.0
  %906 = vmatpush1.msra.mxu0 0.0
  %907 = vmatprep.subr.mxu0 0.0
  %908 = vmatpush1.msra.mxu0 0.0
  %909 = vmatprep.subr.mxu0 0.0
  %910 = vmatpush1.msra.mxu0 0.0
  %911 = vmatprep.subr.mxu0 0.0
  %912 = vmatpush1.msra.mxu0 0.0
  %913 = vmatprep.subr.mxu0 0.0
  %914 = vmatpush1.msra.mxu0 0.0
  %915 = vmatprep.subr.mxu0 0.0
  %916 = vmatpush1.msra.mxu0 0.0
  %917 = vmatprep.subr.mxu0 0.0
  %918 = vmatpush1.msra.mxu0 0.0
  %919 = vmatprep.subr.mxu0 0.0
  %920 = vmatpush1.msra.mxu0 0.0
  %921 = vmatprep.subr.mxu0 0.0
  %922 = vmatpush1.msra.mxu0 0.0
  %923 = vmatprep.subr.mxu0 0.0
  %924 = vmatpush1.msra.mxu0 0.0
  %925 = vmatprep.subr.mxu0 0.0
  %926 = vmatpush1.msra.mxu0 0.0
  %927 = vmatprep.subr.mxu0 0.0
  %928 = vmatpush1.msra.mxu0 0.0
  %929 = vmatprep.subr.mxu0 0.0
  %930 = vmatpush1.msra.mxu0 0.0
  %931 = vmatprep.subr.mxu0 0.0
  %932 = vmatpush1.msra.mxu0 0.0
  %933 = vmatprep.subr.mxu0 0.0
  %934 = vmatpush1.msra.mxu0 0.0
  %935 = vmatprep.subr.mxu0 0.0
  %936 = vmatpush1.msra.mxu0 0.0
  %937 = vmatprep.subr.mxu0 0.0
  %938 = vmatpush1.msra.mxu0 0.0
  %939 = vmatprep.subr.mxu0 0.0
  %940 = vmatpush1.msra.mxu0 0.0
  %941 = vmatprep.subr.mxu0 0.0
  %942 = vmatpush1.msra.mxu0 0.0
  %943 = vmatprep.subr.mxu0 0.0
  %944 = vmatpush1.msra.mxu0 0.0
  %945 = vmatprep.subr.mxu0 0.0
  %946 = vmatpush1.msra.mxu0 0.0
  %947 = vmatprep.subr.mxu0 0.0
  %948 = vmatpush1.msra.mxu0 0.0
  %949 = vmatprep.subr.mxu0 0.0
  %950 = vmatpush1.msra.mxu0 0.0
  %951 = vmatprep.subr.mxu0 0.0
  %952 = vmatpush1.msra.mxu0 0.0
  %953 = vmatprep.subr.mxu0 0.0
  %954 = vmatpush1.msra.mxu0 0.0
  %955 = vmatprep.subr.mxu0 0.0
  %956 = vmatpush1.msra.mxu0 0.0
  %957 = vmatprep.subr.mxu0 0.0
  %958 = vmatpush1.msra.mxu0 0.0
  %959 = vmatprep.subr.mxu0 0.0
  %960 = vmatpush1.msra.mxu0 0.0
  %961 = vmatprep.mubr.f32.mxu0 0.0
  %962 = vmatmul.mubr.f32.gmra.mrb[0].mxu0 %v895
  %v963 = vpop.f32.mrb[0].mxu0
  %v964 = vadd.f32 0.0, %v963
  %v965 = vpop.f32.mrb[0].mxu0
  %966 = vdwg.mxu0
  %v967 = vadd.f32 %v176, %v964
  %v968 = vxor.u32 %v967, 2147483648
  %v969 = vmul.f32 %v968, 1.442695
  %v970 = vpow.pop %v969
  %v971 = vadd.f32 %v970, 1.0
  %v972 = vrcp.pop %v971
  %v973 = vmul.f32 1.0, %v972
  %v974 = vtanh.pop %v967
  %v975 = vmul.f32 %v973, %v883
  %977 = vrot.lane.b32.xlu0 %v974, 64
  %v978 = vpop.permute.xlu0 %977
  %v980 = vmul.f32 %v973, %v978
  %982 = vrot.lane.b32.xlu0 %v980, 32
  %v983 = vpop.permute.xlu0 %982
  %v985 = vadd.f32 %v975, %v983
  %v986 = vtanh.pop %v985
  %988 = vrot.lane.b32.xlu0 %v986, 64
  %v989 = vpop.permute.xlu0 %988
  %v991 = vmul.f32 %v973, %v989
  %993 = vrot.lane.b32.xlu0 %v991, 32
  %v994 = vpop.permute.xlu0 %993
  %996 = vst.msk [vmem:[#allocation2 + $0x38] sm:$0xff] %vm179, %v994
  %v997 = vld [vmem:[#allocation2] sm:$0xff]
  %v998 = vld [vmem:[#allocation2 + $0x8] sm:$0xff]
  %v999 = vld [vmem:[#allocation2 + $0x10] sm:$0xff]
  %v1000 = vld [vmem:[#allocation2 + $0x18] sm:$0xff]
  %v1001 = vld [vmem:[#allocation2 + $0x20] sm:$0xff]
  %v1002 = vld [vmem:[#allocation2 + $0x28] sm:$0xff]
  %v1003 = vld [vmem:[#allocation2 + $0x30] sm:$0xff]
  %v1004 = vld [vmem:[#allocation2 + $0x38] sm:$0xff]
  %v1005 = vld [vmem:[%s4] sm:$0xff]
  %v1006 = vld [vmem:[%s4 + $0x8] sm:$0xff]
  %v1007 = vld [vmem:[%s4 + $0x10] sm:$0xff]
  %v1008 = vld [vmem:[%s4 + $0x18] sm:$0xff]
  %v1009 = vld [vmem:[%s5] sm:$0xff]
  %v1010 = vld [vmem:[%s5 + $0x8] sm:$0xff]
  %v1011 = vld [vmem:[%s5 + $0x10] sm:$0xff]
  %v1012 = vld [vmem:[%s5 + $0x18] sm:$0xff]
  %v1013 = vld [vmem:[%s6] sm:$0x1]
  %v1015 = vlaneseq
  %v1016 = vshrl.u32 %v1015, 7
  %v1017 = vsub.s32 0, %v1016
  %v1018 = vrot.slane %v1013, %v1017
  %v1021 = vsel %vm179, %v997, 0
  %v1024 = vsel %vm179, %v998, 0
  %v1027 = vsel %vm179, %v999, 0
  %v1030 = vsel %vm179, %v1000, 0
  %v1033 = vsel %vm179, %v1001, 0
  %v1036 = vsel %vm179, %v1002, 0
  %v1039 = vsel %vm179, %v1003, 0
  %v1042 = vsel %vm179, %v1004, 0
  %1044 = vmatprep.subr.mxu0 0.0
  %1045 = vmatpush1.msra.mxu0 %v1005
  %1046 = vmatprep.subr.mxu0 0.0
  %1047 = vmatpush1.msra.mxu0 %v1006
  %1048 = vmatprep.subr.mxu0 0.0
  %1049 = vmatpush1.msra.mxu0 %v1007
  %1050 = vmatprep.subr.mxu0 0.0
  %1051 = vmatpush1.msra.mxu0 %v1008
  %1052 = vmatprep.subr.mxu0 0.0
  %1053 = vmatpush1.msra.mxu0 0.0
  %1054 = vmatprep.subr.mxu0 0.0
  %1055 = vmatpush1.msra.mxu0 0.0
  %1056 = vmatprep.subr.mxu0 0.0
  %1057 = vmatpush1.msra.mxu0 0.0
  %1058 = vmatprep.subr.mxu0 0.0
  %1059 = vmatpush1.msra.mxu0 0.0
  %1060 = vmatprep.subr.mxu0 0.0
  %1061 = vmatpush1.msra.mxu0 0.0
  %1062 = vmatprep.subr.mxu0 0.0
  %1063 = vmatpush1.msra.mxu0 0.0
  %1064 = vmatprep.subr.mxu0 0.0
  %1065 = vmatpush1.msra.mxu0 0.0
  %1066 = vmatprep.subr.mxu0 0.0
  %1067 = vmatpush1.msra.mxu0 0.0
  %1068 = vmatprep.subr.mxu0 0.0
  %1069 = vmatpush1.msra.mxu0 0.0
  %1070 = vmatprep.subr.mxu0 0.0
  %1071 = vmatpush1.msra.mxu0 0.0
  %1072 = vmatprep.subr.mxu0 0.0
  %1073 = vmatpush1.msra.mxu0 0.0
  %1074 = vmatprep.subr.mxu0 0.0
  %1075 = vmatpush1.msra.mxu0 0.0
  %1076 = vmatprep.subr.mxu0 0.0
  %1077 = vmatpush1.msra.mxu0 0.0
  %1078 = vmatprep.subr.mxu0 0.0
  %1079 = vmatpush1.msra.mxu0 0.0
  %1080 = vmatprep.subr.mxu0 0.0
  %1081 = vmatpush1.msra.mxu0 0.0
  %1082 = vmatprep.subr.mxu0 0.0
  %1083 = vmatpush1.msra.mxu0 0.0
  %1084 = vmatprep.subr.mxu0 0.0
  %1085 = vmatpush1.msra.mxu0 0.0
  %1086 = vmatprep.subr.mxu0 0.0
  %1087 = vmatpush1.msra.mxu0 0.0
  %1088 = vmatprep.subr.mxu0 0.0
  %1089 = vmatpush1.msra.mxu0 0.0
  %1090 = vmatprep.subr.mxu0 0.0
  %1091 = vmatpush1.msra.mxu0 0.0
  %1092 = vmatprep.subr.mxu0 0.0
  %1093 = vmatpush1.msra.mxu0 0.0
  %1094 = vmatprep.subr.mxu0 0.0
  %1095 = vmatpush1.msra.mxu0 0.0
  %1096 = vmatprep.subr.mxu0 0.0
  %1097 = vmatpush1.msra.mxu0 0.0
  %1098 = vmatprep.subr.mxu0 0.0
  %1099 = vmatpush1.msra.mxu0 0.0
  %1100 = vmatprep.subr.mxu0 0.0
  %1101 = vmatpush1.msra.mxu0 0.0
  %1102 = vmatprep.subr.mxu0 0.0
  %1103 = vmatpush1.msra.mxu0 0.0
  %1104 = vmatprep.subr.mxu0 0.0
  %1105 = vmatpush1.msra.mxu0 0.0
  %1106 = vmatprep.subr.mxu0 0.0
  %1107 = vmatpush1.msra.mxu0 0.0
  %1108 = vmatprep.mubr.f32.mxu0 0.0
  %1109 = vmatmul.mubr.f32.gmra.mrb[0].mxu0 %v1021
  %v1110 = vpop.f32.mrb[0].mxu0
  %v1111 = vadd.f32 %v1018, %v1110
  %v1112 = vpop.f32.mrb[0].mxu0
  %1113 = vmatprep.mubr.f32.mxu0 0.0
  %1114 = vmatmul.mubr.f32.gmra.mrb[0].mxu0 %v1024
  %v1115 = vpop.f32.mrb[0].mxu0
  %v1116 = vadd.f32 %v1018, %v1115
  %v1117 = vpop.f32.mrb[0].mxu0
  %1118 = vmatprep.mubr.f32.mxu0 0.0
  %1119 = vmatmul.mubr.f32.gmra.mrb[0].mxu0 %v1027
  %v1120 = vpop.f32.mrb[0].mxu0
  %v1121 = vadd.f32 %v1018, %v1120
  %v1122 = vpop.f32.mrb[0].mxu0
  %1123 = vmatprep.mubr.f32.mxu0 0.0
  %1124 = vmatmul.mubr.f32.gmra.mrb[0].mxu0 %v1030
  %v1125 = vpop.f32.mrb[0].mxu0
  %v1126 = vadd.f32 %v1018, %v1125
  %v1127 = vpop.f32.mrb[0].mxu0
  %1128 = vmatprep.mubr.f32.mxu0 0.0
  %1129 = vmatmul.mubr.f32.gmra.mrb[0].mxu0 %v1033
  %v1130 = vpop.f32.mrb[0].mxu0
  %v1131 = vadd.f32 %v1018, %v1130
  %v1132 = vpop.f32.mrb[0].mxu0
  %1133 = vmatprep.mubr.f32.mxu0 0.0
  %1134 = vmatmul.mubr.f32.gmra.mrb[0].mxu0 %v1036
  %v1135 = vpop.f32.mrb[0].mxu0
  %v1136 = vadd.f32 %v1018, %v1135
  %v1137 = vpop.f32.mrb[0].mxu0
  %1138 = vmatprep.mubr.f32.mxu0 0.0
  %1139 = vmatmul.mubr.f32.gmra.mrb[0].mxu0 %v1039
  %v1140 = vpop.f32.mrb[0].mxu0
  %v1141 = vadd.f32 %v1018, %v1140
  %v1142 = vpop.f32.mrb[0].mxu0
  %1143 = vmatprep.mubr.f32.mxu0 0.0
  %1144 = vmatmul.mubr.f32.gmra.mrb[0].mxu0 %v1042
  %v1145 = vpop.f32.mrb[0].mxu0
  %v1146 = vadd.f32 %v1018, %v1145
  %v1147 = vpop.f32.mrb[0].mxu0
  %1148 = vdwg.mxu0
  %1149 = vmatprep.subr.mxu0 0.0
  %1150 = vmatpush1.msra.mxu0 %v1009
  %1151 = vmatprep.subr.mxu0 0.0
  %1152 = vmatpush1.msra.mxu0 %v1010
  %1153 = vmatprep.subr.mxu0 0.0
  %1154 = vmatpush1.msra.mxu0 %v1011
  %1155 = vmatprep.subr.mxu0 0.0
  %1156 = vmatpush1.msra.mxu0 %v1012
  %1157 = vmatprep.subr.mxu0 0.0
  %1158 = vmatpush1.msra.mxu0 0.0
  %1159 = vmatprep.subr.mxu0 0.0
  %1160 = vmatpush1.msra.mxu0 0.0
  %1161 = vmatprep.subr.mxu0 0.0
  %1162 = vmatpush1.msra.mxu0 0.0
  %1163 = vmatprep.subr.mxu0 0.0
  %1164 = vmatpush1.msra.mxu0 0.0
  %1165 = vmatprep.subr.mxu0 0.0
  %1166 = vmatpush1.msra.mxu0 0.0
  %1167 = vmatprep.subr.mxu0 0.0
  %1168 = vmatpush1.msra.mxu0 0.0
  %1169 = vmatprep.subr.mxu0 0.0
  %1170 = vmatpush1.msra.mxu0 0.0
  %1171 = vmatprep.subr.mxu0 0.0
  %1172 = vmatpush1.msra.mxu0 0.0
  %1173 = vmatprep.subr.mxu0 0.0
  %1174 = vmatpush1.msra.mxu0 0.0
  %1175 = vmatprep.subr.mxu0 0.0
  %1176 = vmatpush1.msra.mxu0 0.0
  %1177 = vmatprep.subr.mxu0 0.0
  %1178 = vmatpush1.msra.mxu0 0.0
  %1179 = vmatprep.subr.mxu0 0.0
  %1180 = vmatpush1.msra.mxu0 0.0
  %1181 = vmatprep.subr.mxu0 0.0
  %1182 = vmatpush1.msra.mxu0 0.0
  %1183 = vmatprep.subr.mxu0 0.0
  %1184 = vmatpush1.msra.mxu0 0.0
  %1185 = vmatprep.subr.mxu0 0.0
  %1186 = vmatpush1.msra.mxu0 0.0
  %1187 = vmatprep.subr.mxu0 0.0
  %1188 = vmatpush1.msra.mxu0 0.0
  %1189 = vmatprep.subr.mxu0 0.0
  %1190 = vmatpush1.msra.mxu0 0.0
  %1191 = vmatprep.subr.mxu0 0.0
  %1192 = vmatpush1.msra.mxu0 0.0
  %1193 = vmatprep.subr.mxu0 0.0
  %1194 = vmatpush1.msra.mxu0 0.0
  %1195 = vmatprep.subr.mxu0 0.0
  %1196 = vmatpush1.msra.mxu0 0.0
  %1197 = vmatprep.subr.mxu0 0.0
  %1198 = vmatpush1.msra.mxu0 0.0
  %1199 = vmatprep.subr.mxu0 0.0
  %1200 = vmatpush1.msra.mxu0 0.0
  %1201 = vmatprep.subr.mxu0 0.0
  %1202 = vmatpush1.msra.mxu0 0.0
  %1203 = vmatprep.subr.mxu0 0.0
  %1204 = vmatpush1.msra.mxu0 0.0
  %1205 = vmatprep.subr.mxu0 0.0
  %1206 = vmatpush1.msra.mxu0 0.0
  %1207 = vmatprep.subr.mxu0 0.0
  %1208 = vmatpush1.msra.mxu0 0.0
  %1209 = vmatprep.subr.mxu0 0.0
  %1210 = vmatpush1.msra.mxu0 0.0
  %1211 = vmatprep.subr.mxu0 0.0
  %1212 = vmatpush1.msra.mxu0 0.0
  %1213 = vmatprep.mubr.f32.mxu0 0.0
  %1214 = vmatmul.mubr.f32.gmra.mrb[0].mxu0 %v181
  %v1215 = vpop.f32.mrb[0].mxu0
  %v1216 = vadd.f32 0.0, %v1215
  %v1217 = vpop.f32.mrb[0].mxu0
  %1218 = vdwg.mxu0
  %v1219 = vadd.f32 %v1111, %v1216
  %v1220 = vxor.u32 %v1219, 2147483648
  %v1221 = vmul.f32 %v1220, 1.442695
  %v1222 = vpow.pop %v1221
  %v1223 = vadd.f32 %v1222, 1.0
  %v1224 = vrcp.pop %v1223
  %v1225 = vmul.f32 1.0, %v1224
  %v1226 = vtanh.pop %v1219
  %v1227 = vmul.f32 %v1225, 0.0
  %1229 = vrot.lane.b32.xlu0 %v1226, 64
  %v1230 = vpop.permute.xlu0 %1229
  %v1232 = vmul.f32 %v1225, %v1230
  %1234 = vrot.lane.b32.xlu0 %v1232, 32
  %v1235 = vpop.permute.xlu0 %1234
  %v1237 = vadd.f32 %v1227, %v1235
  %v1238 = vtanh.pop %v1237
  %1240 = vrot.lane.b32.xlu0 %v1238, 64
  %v1241 = vpop.permute.xlu0 %1240
  %v1243 = vmul.f32 %v1225, %v1241
  %1245 = vrot.lane.b32.xlu0 %v1243, 32
  %v1246 = vpop.permute.xlu0 %1245
  %1248 = vst.msk [vmem:[#allocation2] sm:$0xff] %vm179, %v1246
  %v1249 = vsel %vm179, %v1246, 0
  %1251 = vmatprep.subr.mxu0 0.0
  %1252 = vmatpush1.msra.mxu0 %v1009
  %1253 = vmatprep.subr.mxu0 0.0
  %1254 = vmatpush1.msra.mxu0 %v1010
  %1255 = vmatprep.subr.mxu0 0.0
  %1256 = vmatpush1.msra.mxu0 %v1011
  %1257 = vmatprep.subr.mxu0 0.0
  %1258 = vmatpush1.msra.mxu0 %v1012
  %1259 = vmatprep.subr.mxu0 0.0
  %1260 = vmatpush1.msra.mxu0 0.0
  %1261 = vmatprep.subr.mxu0 0.0
  %1262 = vmatpush1.msra.mxu0 0.0
  %1263 = vmatprep.subr.mxu0 0.0
  %1264 = vmatpush1.msra.mxu0 0.0
  %1265 = vmatprep.subr.mxu0 0.0
  %1266 = vmatpush1.msra.mxu0 0.0
  %1267 = vmatprep.subr.mxu0 0.0
  %1268 = vmatpush1.msra.mxu0 0.0
  %1269 = vmatprep.subr.mxu0 0.0
  %1270 = vmatpush1.msra.mxu0 0.0
  %1271 = vmatprep.subr.mxu0 0.0
  %1272 = vmatpush1.msra.mxu0 0.0
  %1273 = vmatprep.subr.mxu0 0.0
  %1274 = vmatpush1.msra.mxu0 0.0
  %1275 = vmatprep.subr.mxu0 0.0
  %1276 = vmatpush1.msra.mxu0 0.0
  %1277 = vmatprep.subr.mxu0 0.0
  %1278 = vmatpush1.msra.mxu0 0.0
  %1279 = vmatprep.subr.mxu0 0.0
  %1280 = vmatpush1.msra.mxu0 0.0
  %1281 = vmatprep.subr.mxu0 0.0
  %1282 = vmatpush1.msra.mxu0 0.0
  %1283 = vmatprep.subr.mxu0 0.0
  %1284 = vmatpush1.msra.mxu0 0.0
  %1285 = vmatprep.subr.mxu0 0.0
  %1286 = vmatpush1.msra.mxu0 0.0
  %1287 = vmatprep.subr.mxu0 0.0
  %1288 = vmatpush1.msra.mxu0 0.0
  %1289 = vmatprep.subr.mxu0 0.0
  %1290 = vmatpush1.msra.mxu0 0.0
  %1291 = vmatprep.subr.mxu0 0.0
  %1292 = vmatpush1.msra.mxu0 0.0
  %1293 = vmatprep.subr.mxu0 0.0
  %1294 = vmatpush1.msra.mxu0 0.0
  %1295 = vmatprep.subr.mxu0 0.0
  %1296 = vmatpush1.msra.mxu0 0.0
  %1297 = vmatprep.subr.mxu0 0.0
  %1298 = vmatpush1.msra.mxu0 0.0
  %1299 = vmatprep.subr.mxu0 0.0
  %1300 = vmatpush1.msra.mxu0 0.0
  %1301 = vmatprep.subr.mxu0 0.0
  %1302 = vmatpush1.msra.mxu0 0.0
  %1303 = vmatprep.subr.mxu0 0.0
  %1304 = vmatpush1.msra.mxu0 0.0
  %1305 = vmatprep.subr.mxu0 0.0
  %1306 = vmatpush1.msra.mxu0 0.0
  %1307 = vmatprep.subr.mxu0 0.0
  %1308 = vmatpush1.msra.mxu0 0.0
  %1309 = vmatprep.subr.mxu0 0.0
  %1310 = vmatpush1.msra.mxu0 0.0
  %1311 = vmatprep.subr.mxu0 0.0
  %1312 = vmatpush1.msra.mxu0 0.0
  %1313 = vmatprep.subr.mxu0 0.0
  %1314 = vmatpush1.msra.mxu0 0.0
  %1315 = vmatprep.mubr.f32.mxu0 0.0
  %1316 = vmatmul.mubr.f32.gmra.mrb[0].mxu0 %v1249
  %v1317 = vpop.f32.mrb[0].mxu0
  %v1318 = vadd.f32 0.0, %v1317
  %v1319 = vpop.f32.mrb[0].mxu0
  %1320 = vdwg.mxu0
  %v1321 = vadd.f32 %v1116, %v1318
  %v1322 = vxor.u32 %v1321, 2147483648
  %v1323 = vmul.f32 %v1322, 1.442695
  %v1324 = vpow.pop %v1323
  %v1325 = vadd.f32 %v1324, 1.0
  %v1326 = vrcp.pop %v1325
  %v1327 = vmul.f32 1.0, %v1326
  %v1328 = vtanh.pop %v1321
  %v1329 = vmul.f32 %v1327, %v1237
  %1331 = vrot.lane.b32.xlu0 %v1328, 64
  %v1332 = vpop.permute.xlu0 %1331
  %v1334 = vmul.f32 %v1327, %v1332
  %1336 = vrot.lane.b32.xlu0 %v1334, 32
  %v1337 = vpop.permute.xlu0 %1336
  %v1339 = vadd.f32 %v1329, %v1337
  %v1340 = vtanh.pop %v1339
  %1342 = vrot.lane.b32.xlu0 %v1340, 64
  %v1343 = vpop.permute.xlu0 %1342
  %v1345 = vmul.f32 %v1327, %v1343
  %1347 = vrot.lane.b32.xlu0 %v1345, 32
  %v1348 = vpop.permute.xlu0 %1347
  %1350 = vst.msk [vmem:[#allocation2 + $0x8] sm:$0xff] %vm179, %v1348
  %v1351 = vsel %vm179, %v1348, 0
  %1353 = vmatprep.subr.mxu0 0.0
  %1354 = vmatpush1.msra.mxu0 %v1009
  %1355 = vmatprep.subr.mxu0 0.0
  %1356 = vmatpush1.msra.mxu0 %v1010
  %1357 = vmatprep.subr.mxu0 0.0
  %1358 = vmatpush1.msra.mxu0 %v1011
  %1359 = vmatprep.subr.mxu0 0.0
  %1360 = vmatpush1.msra.mxu0 %v1012
  %1361 = vmatprep.subr.mxu0 0.0
  %1362 = vmatpush1.msra.mxu0 0.0
  %1363 = vmatprep.subr.mxu0 0.0
  %1364 = vmatpush1.msra.mxu0 0.0
  %1365 = vmatprep.subr.mxu0 0.0
  %1366 = vmatpush1.msra.mxu0 0.0
  %1367 = vmatprep.subr.mxu0 0.0
  %1368 = vmatpush1.msra.mxu0 0.0
  %1369 = vmatprep.subr.mxu0 0.0
  %1370 = vmatpush1.msra.mxu0 0.0
  %1371 = vmatprep.subr.mxu0 0.0
  %1372 = vmatpush1.msra.mxu0 0.0
  %1373 = vmatprep.subr.mxu0 0.0
  %1374 = vmatpush1.msra.mxu0 0.0
  %1375 = vmatprep.subr.mxu0 0.0
  %1376 = vmatpush1.msra.mxu0 0.0
  %1377 = vmatprep.subr.mxu0 0.0
  %1378 = vmatpush1.msra.mxu0 0.0
  %1379 = vmatprep.subr.mxu0 0.0
  %1380 = vmatpush1.msra.mxu0 0.0
  %1381 = vmatprep.subr.mxu0 0.0
  %1382 = vmatpush1.msra.mxu0 0.0
  %1383 = vmatprep.subr.mxu0 0.0
  %1384 = vmatpush1.msra.mxu0 0.0
  %1385 = vmatprep.subr.mxu0 0.0
  %1386 = vmatpush1.msra.mxu0 0.0
  %1387 = vmatprep.subr.mxu0 0.0
  %1388 = vmatpush1.msra.mxu0 0.0
  %1389 = vmatprep.subr.mxu0 0.0
  %1390 = vmatpush1.msra.mxu0 0.0
  %1391 = vmatprep.subr.mxu0 0.0
  %1392 = vmatpush1.msra.mxu0 0.0
  %1393 = vmatprep.subr.mxu0 0.0
  %1394 = vmatpush1.msra.mxu0 0.0
  %1395 = vmatprep.subr.mxu0 0.0
  %1396 = vmatpush1.msra.mxu0 0.0
  %1397 = vmatprep.subr.mxu0 0.0
  %1398 = vmatpush1.msra.mxu0 0.0
  %1399 = vmatprep.subr.mxu0 0.0
  %1400 = vmatpush1.msra.mxu0 0.0
  %1401 = vmatprep.subr.mxu0 0.0
  %1402 = vmatpush1.msra.mxu0 0.0
  %1403 = vmatprep.subr.mxu0 0.0
  %1404 = vmatpush1.msra.mxu0 0.0
  %1405 = vmatprep.subr.mxu0 0.0
  %1406 = vmatpush1.msra.mxu0 0.0
  %1407 = vmatprep.subr.mxu0 0.0
  %1408 = vmatpush1.msra.mxu0 0.0
  %1409 = vmatprep.subr.mxu0 0.0
  %1410 = vmatpush1.msra.mxu0 0.0
  %1411 = vmatprep.subr.mxu0 0.0
  %1412 = vmatpush1.msra.mxu0 0.0
  %1413 = vmatprep.subr.mxu0 0.0
  %1414 = vmatpush1.msra.mxu0 0.0
  %1415 = vmatprep.subr.mxu0 0.0
  %1416 = vmatpush1.msra.mxu0 0.0
  %1417 = vmatprep.mubr.f32.mxu0 0.0
  %1418 = vmatmul.mubr.f32.gmra.mrb[0].mxu0 %v1351
  %v1419 = vpop.f32.mrb[0].mxu0
  %v1420 = vadd.f32 0.0, %v1419
  %v1421 = vpop.f32.mrb[0].mxu0
  %1422 = vdwg.mxu0
  %v1423 = vadd.f32 %v1121, %v1420
  %v1424 = vxor.u32 %v1423, 2147483648
  %v1425 = vmul.f32 %v1424, 1.442695
  %v1426 = vpow.pop %v1425
  %v1427 = vadd.f32 %v1426, 1.0
  %v1428 = vrcp.pop %v1427
  %v1429 = vmul.f32 1.0, %v1428
  %v1430 = vtanh.pop %v1423
  %v1431 = vmul.f32 %v1429, %v1339
  %1433 = vrot.lane.b32.xlu0 %v1430, 64
  %v1434 = vpop.permute.xlu0 %1433
  %v1436 = vmul.f32 %v1429, %v1434
  %1438 = vrot.lane.b32.xlu0 %v1436, 32
  %v1439 = vpop.permute.xlu0 %1438
  %v1441 = vadd.f32 %v1431, %v1439
  %v1442 = vtanh.pop %v1441
  %1444 = vrot.lane.b32.xlu0 %v1442, 64
  %v1445 = vpop.permute.xlu0 %1444
  %v1447 = vmul.f32 %v1429, %v1445
  %1449 = vrot.lane.b32.xlu0 %v1447, 32
  %v1450 = vpop.permute.xlu0 %1449
  %1452 = vst.msk [vmem:[#allocation2 + $0x10] sm:$0xff] %vm179, %v1450
  %v1453 = vsel %vm179, %v1450, 0
  %1455 = vmatprep.subr.mxu0 0.0
  %1456 = vmatpush1.msra.mxu0 %v1009
  %1457 = vmatprep.subr.mxu0 0.0
  %1458 = vmatpush1.msra.mxu0 %v1010
  %1459 = vmatprep.subr.mxu0 0.0
  %1460 = vmatpush1.msra.mxu0 %v1011
  %1461 = vmatprep.subr.mxu0 0.0
  %1462 = vmatpush1.msra.mxu0 %v1012
  %1463 = vmatprep.subr.mxu0 0.0
  %1464 = vmatpush1.msra.mxu0 0.0
  %1465 = vmatprep.subr.mxu0 0.0
  %1466 = vmatpush1.msra.mxu0 0.0
  %1467 = vmatprep.subr.mxu0 0.0
  %1468 = vmatpush1.msra.mxu0 0.0
  %1469 = vmatprep.subr.mxu0 0.0
  %1470 = vmatpush1.msra.mxu0 0.0
  %1471 = vmatprep.subr.mxu0 0.0
  %1472 = vmatpush1.msra.mxu0 0.0
  %1473 = vmatprep.subr.mxu0 0.0
  %1474 = vmatpush1.msra.mxu0 0.0
  %1475 = vmatprep.subr.mxu0 0.0
  %1476 = vmatpush1.msra.mxu0 0.0
  %1477 = vmatprep.subr.mxu0 0.0
  %1478 = vmatpush1.msra.mxu0 0.0
  %1479 = vmatprep.subr.mxu0 0.0
  %1480 = vmatpush1.msra.mxu0 0.0
  %1481 = vmatprep.subr.mxu0 0.0
  %1482 = vmatpush1.msra.mxu0 0.0
  %1483 = vmatprep.subr.mxu0 0.0
  %1484 = vmatpush1.msra.mxu0 0.0
  %1485 = vmatprep.subr.mxu0 0.0
  %1486 = vmatpush1.msra.mxu0 0.0
  %1487 = vmatprep.subr.mxu0 0.0
  %1488 = vmatpush1.msra.mxu0 0.0
  %1489 = vmatprep.subr.mxu0 0.0
  %1490 = vmatpush1.msra.mxu0 0.0
  %1491 = vmatprep.subr.mxu0 0.0
  %1492 = vmatpush1.msra.mxu0 0.0
  %1493 = vmatprep.subr.mxu0 0.0
  %1494 = vmatpush1.msra.mxu0 0.0
  %1495 = vmatprep.subr.mxu0 0.0
  %1496 = vmatpush1.msra.mxu0 0.0
  %1497 = vmatprep.subr.mxu0 0.0
  %1498 = vmatpush1.msra.mxu0 0.0
  %1499 = vmatprep.subr.mxu0 0.0
  %1500 = vmatpush1.msra.mxu0 0.0
  %1501 = vmatprep.subr.mxu0 0.0
  %1502 = vmatpush1.msra.mxu0 0.0
  %1503 = vmatprep.subr.mxu0 0.0
  %1504 = vmatpush1.msra.mxu0 0.0
  %1505 = vmatprep.subr.mxu0 0.0
  %1506 = vmatpush1.msra.mxu0 0.0
  %1507 = vmatprep.subr.mxu0 0.0
  %1508 = vmatpush1.msra.mxu0 0.0
  %1509 = vmatprep.subr.mxu0 0.0
  %1510 = vmatpush1.msra.mxu0 0.0
  %1511 = vmatprep.subr.mxu0 0.0
  %1512 = vmatpush1.msra.mxu0 0.0
  %1513 = vmatprep.subr.mxu0 0.0
  %1514 = vmatpush1.msra.mxu0 0.0
  %1515 = vmatprep.subr.mxu0 0.0
  %1516 = vmatpush1.msra.mxu0 0.0
  %1517 = vmatprep.subr.mxu0 0.0
  %1518 = vmatpush1.msra.mxu0 0.0
  %1519 = vmatprep.mubr.f32.mxu0 0.0
  %1520 = vmatmul.mubr.f32.gmra.mrb[0].mxu0 %v1453
  %v1521 = vpop.f32.mrb[0].mxu0
  %v1522 = vadd.f32 0.0, %v1521
  %v1523 = vpop.f32.mrb[0].mxu0
  %1524 = vdwg.mxu0
  %v1525 = vadd.f32 %v1126, %v1522
  %v1526 = vxor.u32 %v1525, 2147483648
  %v1527 = vmul.f32 %v1526, 1.442695
  %v1528 = vpow.pop %v1527
  %v1529 = vadd.f32 %v1528, 1.0
  %v1530 = vrcp.pop %v1529
  %v1531 = vmul.f32 1.0, %v1530
  %v1532 = vtanh.pop %v1525
  %v1533 = vmul.f32 %v1531, %v1441
  %1535 = vrot.lane.b32.xlu0 %v1532, 64
  %v1536 = vpop.permute.xlu0 %1535
  %v1538 = vmul.f32 %v1531, %v1536
  %1540 = vrot.lane.b32.xlu0 %v1538, 32
  %v1541 = vpop.permute.xlu0 %1540
  %v1543 = vadd.f32 %v1533, %v1541
  %v1544 = vtanh.pop %v1543
  %1546 = vrot.lane.b32.xlu0 %v1544, 64
  %v1547 = vpop.permute.xlu0 %1546
  %v1549 = vmul.f32 %v1531, %v1547
  %1551 = vrot.lane.b32.xlu0 %v1549, 32
  %v1552 = vpop.permute.xlu0 %1551
  %1554 = vst.msk [vmem:[#allocation2 + $0x18] sm:$0xff] %vm179, %v1552
  %v1555 = vsel %vm179, %v1552, 0
  %1557 = vmatprep.subr.mxu0 0.0
  %1558 = vmatpush1.msra.mxu0 %v1009
  %1559 = vmatprep.subr.mxu0 0.0
  %1560 = vmatpush1.msra.mxu0 %v1010
  %1561 = vmatprep.subr.mxu0 0.0
  %1562 = vmatpush1.msra.mxu0 %v1011
  %1563 = vmatprep.subr.mxu0 0.0
  %1564 = vmatpush1.msra.mxu0 %v1012
  %1565 = vmatprep.subr.mxu0 0.0
  %1566 = vmatpush1.msra.mxu0 0.0
  %1567 = vmatprep.subr.mxu0 0.0
  %1568 = vmatpush1.msra.mxu0 0.0
  %1569 = vmatprep.subr.mxu0 0.0
  %1570 = vmatpush1.msra.mxu0 0.0
  %1571 = vmatprep.subr.mxu0 0.0
  %1572 = vmatpush1.msra.mxu0 0.0
  %1573 = vmatprep.subr.mxu0 0.0
  %1574 = vmatpush1.msra.mxu0 0.0
  %1575 = vmatprep.subr.mxu0 0.0
  %1576 = vmatpush1.msra.mxu0 0.0
  %1577 = vmatprep.subr.mxu0 0.0
  %1578 = vmatpush1.msra.mxu0 0.0
  %1579 = vmatprep.subr.mxu0 0.0
  %1580 = vmatpush1.msra.mxu0 0.0
  %1581 = vmatprep.subr.mxu0 0.0
  %1582 = vmatpush1.msra.mxu0 0.0
  %1583 = vmatprep.subr.mxu0 0.0
  %1584 = vmatpush1.msra.mxu0 0.0
  %1585 = vmatprep.subr.mxu0 0.0
  %1586 = vmatpush1.msra.mxu0 0.0
  %1587 = vmatprep.subr.mxu0 0.0
  %1588 = vmatpush1.msra.mxu0 0.0
  %1589 = vmatprep.subr.mxu0 0.0
  %1590 = vmatpush1.msra.mxu0 0.0
  %1591 = vmatprep.subr.mxu0 0.0
  %1592 = vmatpush1.msra.mxu0 0.0
  %1593 = vmatprep.subr.mxu0 0.0
  %1594 = vmatpush1.msra.mxu0 0.0
  %1595 = vmatprep.subr.mxu0 0.0
  %1596 = vmatpush1.msra.mxu0 0.0
  %1597 = vmatprep.subr.mxu0 0.0
  %1598 = vmatpush1.msra.mxu0 0.0
  %1599 = vmatprep.subr.mxu0 0.0
  %1600 = vmatpush1.msra.mxu0 0.0
  %1601 = vmatprep.subr.mxu0 0.0
  %1602 = vmatpush1.msra.mxu0 0.0
  %1603 = vmatprep.subr.mxu0 0.0
  %1604 = vmatpush1.msra.mxu0 0.0
  %1605 = vmatprep.subr.mxu0 0.0
  %1606 = vmatpush1.msra.mxu0 0.0
  %1607 = vmatprep.subr.mxu0 0.0
  %1608 = vmatpush1.msra.mxu0 0.0
  %1609 = vmatprep.subr.mxu0 0.0
  %1610 = vmatpush1.msra.mxu0 0.0
  %1611 = vmatprep.subr.mxu0 0.0
  %1612 = vmatpush1.msra.mxu0 0.0
  %1613 = vmatprep.subr.mxu0 0.0
  %1614 = vmatpush1.msra.mxu0 0.0
  %1615 = vmatprep.subr.mxu0 0.0
  %1616 = vmatpush1.msra.mxu0 0.0
  %1617 = vmatprep.subr.mxu0 0.0
  %1618 = vmatpush1.msra.mxu0 0.0
  %1619 = vmatprep.subr.mxu0 0.0
  %1620 = vmatpush1.msra.mxu0 0.0
  %1621 = vmatprep.mubr.f32.mxu0 0.0
  %1622 = vmatmul.mubr.f32.gmra.mrb[0].mxu0 %v1555
  %v1623 = vpop.f32.mrb[0].mxu0
  %v1624 = vadd.f32 0.0, %v1623
  %v1625 = vpop.f32.mrb[0].mxu0
  %1626 = vdwg.mxu0
  %v1627 = vadd.f32 %v1131, %v1624
  %v1628 = vxor.u32 %v1627, 2147483648
  %v1629 = vmul.f32 %v1628, 1.442695
  %v1630 = vpow.pop %v1629
  %v1631 = vadd.f32 %v1630, 1.0
  %v1632 = vrcp.pop %v1631
  %v1633 = vmul.f32 1.0, %v1632
  %v1634 = vtanh.pop %v1627
  %v1635 = vmul.f32 %v1633, %v1543
  %1637 = vrot.lane.b32.xlu0 %v1634, 64
  %v1638 = vpop.permute.xlu0 %1637
  %v1640 = vmul.f32 %v1633, %v1638
  %1642 = vrot.lane.b32.xlu0 %v1640, 32
  %v1643 = vpop.permute.xlu0 %1642
  %v1645 = vadd.f32 %v1635, %v1643
  %v1646 = vtanh.pop %v1645
  %1648 = vrot.lane.b32.xlu0 %v1646, 64
  %v1649 = vpop.permute.xlu0 %1648
  %v1651 = vmul.f32 %v1633, %v1649
  %1653 = vrot.lane.b32.xlu0 %v1651, 32
  %v1654 = vpop.permute.xlu0 %1653
  %1656 = vst.msk [vmem:[#allocation2 + $0x20] sm:$0xff] %vm179, %v1654
  %v1657 = vsel %vm179, %v1654, 0
  %1659 = vmatprep.subr.mxu0 0.0
  %1660 = vmatpush1.msra.mxu0 %v1009
  %1661 = vmatprep.subr.mxu0 0.0
  %1662 = vmatpush1.msra.mxu0 %v1010
  %1663 = vmatprep.subr.mxu0 0.0
  %1664 = vmatpush1.msra.mxu0 %v1011
  %1665 = vmatprep.subr.mxu0 0.0
  %1666 = vmatpush1.msra.mxu0 %v1012
  %1667 = vmatprep.subr.mxu0 0.0
  %1668 = vmatpush1.msra.mxu0 0.0
  %1669 = vmatprep.subr.mxu0 0.0
  %1670 = vmatpush1.msra.mxu0 0.0
  %1671 = vmatprep.subr.mxu0 0.0
  %1672 = vmatpush1.msra.mxu0 0.0
  %1673 = vmatprep.subr.mxu0 0.0
  %1674 = vmatpush1.msra.mxu0 0.0
  %1675 = vmatprep.subr.mxu0 0.0
  %1676 = vmatpush1.msra.mxu0 0.0
  %1677 = vmatprep.subr.mxu0 0.0
  %1678 = vmatpush1.msra.mxu0 0.0
  %1679 = vmatprep.subr.mxu0 0.0
  %1680 = vmatpush1.msra.mxu0 0.0
  %1681 = vmatprep.subr.mxu0 0.0
  %1682 = vmatpush1.msra.mxu0 0.0
  %1683 = vmatprep.subr.mxu0 0.0
  %1684 = vmatpush1.msra.mxu0 0.0
  %1685 = vmatprep.subr.mxu0 0.0
  %1686 = vmatpush1.msra.mxu0 0.0
  %1687 = vmatprep.subr.mxu0 0.0
  %1688 = vmatpush1.msra.mxu0 0.0
  %1689 = vmatprep.subr.mxu0 0.0
  %1690 = vmatpush1.msra.mxu0 0.0
  %1691 = vmatprep.subr.mxu0 0.0
  %1692 = vmatpush1.msra.mxu0 0.0
  %1693 = vmatprep.subr.mxu0 0.0
  %1694 = vmatpush1.msra.mxu0 0.0
  %1695 = vmatprep.subr.mxu0 0.0
  %1696 = vmatpush1.msra.mxu0 0.0
  %1697 = vmatprep.subr.mxu0 0.0
  %1698 = vmatpush1.msra.mxu0 0.0
  %1699 = vmatprep.subr.mxu0 0.0
  %1700 = vmatpush1.msra.mxu0 0.0
  %1701 = vmatprep.subr.mxu0 0.0
  %1702 = vmatpush1.msra.mxu0 0.0
  %1703 = vmatprep.subr.mxu0 0.0
  %1704 = vmatpush1.msra.mxu0 0.0
  %1705 = vmatprep.subr.mxu0 0.0
  %1706 = vmatpush1.msra.mxu0 0.0
  %1707 = vmatprep.subr.mxu0 0.0
  %1708 = vmatpush1.msra.mxu0 0.0
  %1709 = vmatprep.subr.mxu0 0.0
  %1710 = vmatpush1.msra.mxu0 0.0
  %1711 = vmatprep.subr.mxu0 0.0
  %1712 = vmatpush1.msra.mxu0 0.0
  %1713 = vmatprep.subr.mxu0 0.0
  %1714 = vmatpush1.msra.mxu0 0.0
  %1715 = vmatprep.subr.mxu0 0.0
  %1716 = vmatpush1.msra.mxu0 0.0
  %1717 = vmatprep.subr.mxu0 0.0
  %1718 = vmatpush1.msra.mxu0 0.0
  %1719 = vmatprep.subr.mxu0 0.0
  %1720 = vmatpush1.msra.mxu0 0.0
  %1721 = vmatprep.subr.mxu0 0.0
  %1722 = vmatpush1.msra.mxu0 0.0
  %1723 = vmatprep.mubr.f32.mxu0 0.0
  %1724 = vmatmul.mubr.f32.gmra.mrb[0].mxu0 %v1657
  %v1725 = vpop.f32.mrb[0].mxu0
  %v1726 = vadd.f32 0.0, %v1725
  %v1727 = vpop.f32.mrb[0].mxu0
  %1728 = vdwg.mxu0
  %v1729 = vadd.f32 %v1136, %v1726
  %v1730 = vxor.u32 %v1729, 2147483648
  %v1731 = vmul.f32 %v1730, 1.442695
  %v1732 = vpow.pop %v1731
  %v1733 = vadd.f32 %v1732, 1.0
  %v1734 = vrcp.pop %v1733
  %v1735 = vmul.f32 1.0, %v1734
  %v1736 = vtanh.pop %v1729
  %v1737 = vmul.f32 %v1735, %v1645
  %1739 = vrot.lane.b32.xlu0 %v1736, 64
  %v1740 = vpop.permute.xlu0 %1739
  %v1742 = vmul.f32 %v1735, %v1740
  %1744 = vrot.lane.b32.xlu0 %v1742, 32
  %v1745 = vpop.permute.xlu0 %1744
  %v1747 = vadd.f32 %v1737, %v1745
  %v1748 = vtanh.pop %v1747
  %1750 = vrot.lane.b32.xlu0 %v1748, 64
  %v1751 = vpop.permute.xlu0 %1750
  %v1753 = vmul.f32 %v1735, %v1751
  %1755 = vrot.lane.b32.xlu0 %v1753, 32
  %v1756 = vpop.permute.xlu0 %1755
  %1758 = vst.msk [vmem:[#allocation2 + $0x28] sm:$0xff] %vm179, %v1756
  %v1759 = vsel %vm179, %v1756, 0
  %1761 = vmatprep.subr.mxu0 0.0
  %1762 = vmatpush1.msra.mxu0 %v1009
  %1763 = vmatprep.subr.mxu0 0.0
  %1764 = vmatpush1.msra.mxu0 %v1010
  %1765 = vmatprep.subr.mxu0 0.0
  %1766 = vmatpush1.msra.mxu0 %v1011
  %1767 = vmatprep.subr.mxu0 0.0
  %1768 = vmatpush1.msra.mxu0 %v1012
  %1769 = vmatprep.subr.mxu0 0.0
  %1770 = vmatpush1.msra.mxu0 0.0
  %1771 = vmatprep.subr.mxu0 0.0
  %1772 = vmatpush1.msra.mxu0 0.0
  %1773 = vmatprep.subr.mxu0 0.0
  %1774 = vmatpush1.msra.mxu0 0.0
  %1775 = vmatprep.subr.mxu0 0.0
  %1776 = vmatpush1.msra.mxu0 0.0
  %1777 = vmatprep.subr.mxu0 0.0
  %1778 = vmatpush1.msra.mxu0 0.0
  %1779 = vmatprep.subr.mxu0 0.0
  %1780 = vmatpush1.msra.mxu0 0.0
  %1781 = vmatprep.subr.mxu0 0.0
  %1782 = vmatpush1.msra.mxu0 0.0
  %1783 = vmatprep.subr.mxu0 0.0
  %1784 = vmatpush1.msra.mxu0 0.0
  %1785 = vmatprep.subr.mxu0 0.0
  %1786 = vmatpush1.msra.mxu0 0.0
  %1787 = vmatprep.subr.mxu0 0.0
  %1788 = vmatpush1.msra.mxu0 0.0
  %1789 = vmatprep.subr.mxu0 0.0
  %1790 = vmatpush1.msra.mxu0 0.0
  %1791 = vmatprep.subr.mxu0 0.0
  %1792 = vmatpush1.msra.mxu0 0.0
  %1793 = vmatprep.subr.mxu0 0.0
  %1794 = vmatpush1.msra.mxu0 0.0
  %1795 = vmatprep.subr.mxu0 0.0
  %1796 = vmatpush1.msra.mxu0 0.0
  %1797 = vmatprep.subr.mxu0 0.0
  %1798 = vmatpush1.msra.mxu0 0.0
  %1799 = vmatprep.subr.mxu0 0.0
  %1800 = vmatpush1.msra.mxu0 0.0
  %1801 = vmatprep.subr.mxu0 0.0
  %1802 = vmatpush1.msra.mxu0 0.0
  %1803 = vmatprep.subr.mxu0 0.0
  %1804 = vmatpush1.msra.mxu0 0.0
  %1805 = vmatprep.subr.mxu0 0.0
  %1806 = vmatpush1.msra.mxu0 0.0
  %1807 = vmatprep.subr.mxu0 0.0
  %1808 = vmatpush1.msra.mxu0 0.0
  %1809 = vmatprep.subr.mxu0 0.0
  %1810 = vmatpush1.msra.mxu0 0.0
  %1811 = vmatprep.subr.mxu0 0.0
  %1812 = vmatpush1.msra.mxu0 0.0
  %1813 = vmatprep.subr.mxu0 0.0
  %1814 = vmatpush1.msra.mxu0 0.0
  %1815 = vmatprep.subr.mxu0 0.0
  %1816 = vmatpush1.msra.mxu0 0.0
  %1817 = vmatprep.subr.mxu0 0.0
  %1818 = vmatpush1.msra.mxu0 0.0
  %1819 = vmatprep.subr.mxu0 0.0
  %1820 = vmatpush1.msra.mxu0 0.0
  %1821 = vmatprep.subr.mxu0 0.0
  %1822 = vmatpush1.msra.mxu0 0.0
  %1823 = vmatprep.subr.mxu0 0.0
  %1824 = vmatpush1.msra.mxu0 0.0
  %1825 = vmatprep.mubr.f32.mxu0 0.0
  %1826 = vmatmul.mubr.f32.gmra.mrb[0].mxu0 %v1759
  %v1827 = vpop.f32.mrb[0].mxu0
  %v1828 = vadd.f32 0.0, %v1827
  %v1829 = vpop.f32.mrb[0].mxu0
  %1830 = vdwg.mxu0
  %v1831 = vadd.f32 %v1141, %v1828
  %v1832 = vxor.u32 %v1831, 2147483648
  %v1833 = vmul.f32 %v1832, 1.442695
  %v1834 = vpow.pop %v1833
  %v1835 = vadd.f32 %v1834, 1.0
  %v1836 = vrcp.pop %v1835
  %v1837 = vmul.f32 1.0, %v1836
  %v1838 = vtanh.pop %v1831
  %v1839 = vmul.f32 %v1837, %v1747
  %1841 = vrot.lane.b32.xlu0 %v1838, 64
  %v1842 = vpop.permute.xlu0 %1841
  %v1844 = vmul.f32 %v1837, %v1842
  %1846 = vrot.lane.b32.xlu0 %v1844, 32
  %v1847 = vpop.permute.xlu0 %1846
  %v1849 = vadd.f32 %v1839, %v1847
  %v1850 = vtanh.pop %v1849
  %1852 = vrot.lane.b32.xlu0 %v1850, 64
  %v1853 = vpop.permute.xlu0 %1852
  %v1855 = vmul.f32 %v1837, %v1853
  %1857 = vrot.lane.b32.xlu0 %v1855, 32
  %v1858 = vpop.permute.xlu0 %1857
  %1860 = vst.msk [vmem:[#allocation2 + $0x30] sm:$0xff] %vm179, %v1858
  %v1861 = vsel %vm179, %v1858, 0
  %1863 = vmatprep.subr.mxu0 0.0
  %1864 = vmatpush1.msra.mxu0 %v1009
  %1865 = vmatprep.subr.mxu0 0.0
  %1866 = vmatpush1.msra.mxu0 %v1010
  %1867 = vmatprep.subr.mxu0 0.0
  %1868 = vmatpush1.msra.mxu0 %v1011
  %1869 = vmatprep.subr.mxu0 0.0
  %1870 = vmatpush1.msra.mxu0 %v1012
  %1871 = vmatprep.subr.mxu0 0.0
  %1872 = vmatpush1.msra.mxu0 0.0
  %1873 = vmatprep.subr.mxu0 0.0
  %1874 = vmatpush1.msra.mxu0 0.0
  %1875 = vmatprep.subr.mxu0 0.0
  %1876 = vmatpush1.msra.mxu0 0.0
  %1877 = vmatprep.subr.mxu0 0.0
  %1878 = vmatpush1.msra.mxu0 0.0
  %1879 = vmatprep.subr.mxu0 0.0
  %1880 = vmatpush1.msra.mxu0 0.0
  %1881 = vmatprep.subr.mxu0 0.0
  %1882 = vmatpush1.msra.mxu0 0.0
  %1883 = vmatprep.subr.mxu0 0.0
  %1884 = vmatpush1.msra.mxu0 0.0
  %1885 = vmatprep.subr.mxu0 0.0
  %1886 = vmatpush1.msra.mxu0 0.0
  %1887 = vmatprep.subr.mxu0 0.0
  %1888 = vmatpush1.msra.mxu0 0.0
  %1889 = vmatprep.subr.mxu0 0.0
  %1890 = vmatpush1.msra.mxu0 0.0
  %1891 = vmatprep.subr.mxu0 0.0
  %1892 = vmatpush1.msra.mxu0 0.0
  %1893 = vmatprep.subr.mxu0 0.0
  %1894 = vmatpush1.msra.mxu0 0.0
  %1895 = vmatprep.subr.mxu0 0.0
  %1896 = vmatpush1.msra.mxu0 0.0
  %1897 = vmatprep.subr.mxu0 0.0
  %1898 = vmatpush1.msra.mxu0 0.0
  %1899 = vmatprep.subr.mxu0 0.0
  %1900 = vmatpush1.msra.mxu0 0.0
  %1901 = vmatprep.subr.mxu0 0.0
  %1902 = vmatpush1.msra.mxu0 0.0
  %1903 = vmatprep.subr.mxu0 0.0
  %1904 = vmatpush1.msra.mxu0 0.0
  %1905 = vmatprep.subr.mxu0 0.0
  %1906 = vmatpush1.msra.mxu0 0.0
  %1907 = vmatprep.subr.mxu0 0.0
  %1908 = vmatpush1.msra.mxu0 0.0
  %1909 = vmatprep.subr.mxu0 0.0
  %1910 = vmatpush1.msra.mxu0 0.0
  %1911 = vmatprep.subr.mxu0 0.0
  %1912 = vmatpush1.msra.mxu0 0.0
  %1913 = vmatprep.subr.mxu0 0.0
  %1914 = vmatpush1.msra.mxu0 0.0
  %1915 = vmatprep.subr.mxu0 0.0
  %1916 = vmatpush1.msra.mxu0 0.0
  %1917 = vmatprep.subr.mxu0 0.0
  %1918 = vmatpush1.msra.mxu0 0.0
  %1919 = vmatprep.subr.mxu0 0.0
  %1920 = vmatpush1.msra.mxu0 0.0
  %1921 = vmatprep.subr.mxu0 0.0
  %1922 = vmatpush1.msra.mxu0 0.0
  %1923 = vmatprep.subr.mxu0 0.0
  %1924 = vmatpush1.msra.mxu0 0.0
  %1925 = vmatprep.subr.mxu0 0.0
  %1926 = vmatpush1.msra.mxu0 0.0
  %1927 = vmatprep.mubr.f32.mxu0 0.0
  %1928 = vmatmul.mubr.f32.gmra.mrb[0].mxu0 %v1861
  %v1929 = vpop.f32.mrb[0].mxu0
  %v1930 = vadd.f32 0.0, %v1929
  %v1931 = vpop.f32.mrb[0].mxu0
  %1932 = vdwg.mxu0
  %v1933 = vadd.f32 %v1146, %v1930
  %v1934 = vxor.u32 %v1933, 2147483648
  %v1935 = vmul.f32 %v1934, 1.442695
  %v1936 = vpow.pop %v1935
  %v1937 = vadd.f32 %v1936, 1.0
  %v1938 = vrcp.pop %v1937
  %v1939 = vmul.f32 1.0, %v1938
  %v1940 = vtanh.pop %v1933
  %v1941 = vmul.f32 %v1939, %v1849
  %1943 = vrot.lane.b32.xlu0 %v1940, 64
  %v1944 = vpop.permute.xlu0 %1943
  %v1946 = vmul.f32 %v1939, %v1944
  %1948 = vrot.lane.b32.xlu0 %v1946, 32
  %v1949 = vpop.permute.xlu0 %1948
  %v1951 = vadd.f32 %v1941, %v1949
  %v1952 = vtanh.pop %v1951
  %1954 = vrot.lane.b32.xlu0 %v1952, 64
  %v1955 = vpop.permute.xlu0 %1954
  %v1957 = vmul.f32 %v1939, %v1955
  %1959 = vrot.lane.b32.xlu0 %v1957, 32
  %v1960 = vpop.permute.xlu0 %1959
  %1962 = vst.msk [vmem:[#allocation2 + $0x38] sm:$0xff] %vm179, %v1960
  %v1963 = vld [vmem:[#allocation2] sm:$0xff]
  %v1964 = vld [vmem:[#allocation2 + $0x8] sm:$0xff]
  %v1965 = vld [vmem:[#allocation2 + $0x10] sm:$0xff]
  %v1966 = vld [vmem:[#allocation2 + $0x18] sm:$0xff]
  %v1967 = vld [vmem:[#allocation2 + $0x20] sm:$0xff]
  %v1968 = vld [vmem:[#allocation2 + $0x28] sm:$0xff]
  %v1969 = vld [vmem:[#allocation2 + $0x30] sm:$0xff]
  %v1970 = vld [vmem:[#allocation2 + $0x38] sm:$0xff]
  %v1971 = vld [vmem:[%s7] sm:$0xff]
  %v1972 = vld [vmem:[%s7 + $0x8] sm:$0xff]
  %v1973 = vld [vmem:[%s7 + $0x10] sm:$0xff]
  %v1974 = vld [vmem:[%s7 + $0x18] sm:$0xff]
  %v1976 = vsel %vm179, %v1963, 0
  %v1979 = vsel %vm179, %v1964, 0
  %v1982 = vsel %vm179, %v1965, 0
  %v1985 = vsel %vm179, %v1966, 0
  %v1988 = vsel %vm179, %v1967, 0
  %v1991 = vsel %vm179, %v1968, 0
  %v1994 = vsel %vm179, %v1969, 0
  %v1997 = vsel %vm179, %v1970, 0
  %1999 = vmatprep.subr.mxu0 0.0
  %2000 = vmatpush1.msra.mxu0 %v1971
  %2001 = vmatprep.subr.mxu0 0.0
  %2002 = vmatpush1.msra.mxu0 %v1972
  %2003 = vmatprep.subr.mxu0 0.0
  %2004 = vmatpush1.msra.mxu0 %v1973
  %2005 = vmatprep.subr.mxu0 0.0
  %2006 = vmatpush1.msra.mxu0 %v1974
  %2007 = vmatprep.subr.mxu0 0.0
  %2008 = vmatpush1.msra.mxu0 0.0
  %2009 = vmatprep.subr.mxu0 0.0
  %2010 = vmatpush1.msra.mxu0 0.0
  %2011 = vmatprep.subr.mxu0 0.0
  %2012 = vmatpush1.msra.mxu0 0.0
  %2013 = vmatprep.subr.mxu0 0.0
  %2014 = vmatpush1.msra.mxu0 0.0
  %2015 = vmatprep.subr.mxu0 0.0
  %2016 = vmatpush1.msra.mxu0 0.0
  %2017 = vmatprep.subr.mxu0 0.0
  %2018 = vmatpush1.msra.mxu0 0.0
  %2019 = vmatprep.subr.mxu0 0.0
  %2020 = vmatpush1.msra.mxu0 0.0
  %2021 = vmatprep.subr.mxu0 0.0
  %2022 = vmatpush1.msra.mxu0 0.0
  %2023 = vmatprep.subr.mxu0 0.0
  %2024 = vmatpush1.msra.mxu0 0.0
  %2025 = vmatprep.subr.mxu0 0.0
  %2026 = vmatpush1.msra.mxu0 0.0
  %2027 = vmatprep.subr.mxu0 0.0
  %2028 = vmatpush1.msra.mxu0 0.0
  %2029 = vmatprep.subr.mxu0 0.0
  %2030 = vmatpush1.msra.mxu0 0.0
  %2031 = vmatprep.subr.mxu0 0.0
  %2032 = vmatpush1.msra.mxu0 0.0
  %2033 = vmatprep.subr.mxu0 0.0
  %2034 = vmatpush1.msra.mxu0 0.0
  %2035 = vmatprep.subr.mxu0 0.0
  %2036 = vmatpush1.msra.mxu0 0.0
  %2037 = vmatprep.subr.mxu0 0.0
  %2038 = vmatpush1.msra.mxu0 0.0
  %2039 = vmatprep.subr.mxu0 0.0
  %2040 = vmatpush1.msra.mxu0 0.0
  %2041 = vmatprep.subr.mxu0 0.0
  %2042 = vmatpush1.msra.mxu0 0.0
  %2043 = vmatprep.subr.mxu0 0.0
  %2044 = vmatpush1.msra.mxu0 0.0
  %2045 = vmatprep.subr.mxu0 0.0
  %2046 = vmatpush1.msra.mxu0 0.0
  %2047 = vmatprep.subr.mxu0 0.0
  %2048 = vmatpush1.msra.mxu0 0.0
  %2049 = vmatprep.subr.mxu0 0.0
  %2050 = vmatpush1.msra.mxu0 0.0
  %2051 = vmatprep.subr.mxu0 0.0
  %2052 = vmatpush1.msra.mxu0 0.0
  %2053 = vmatprep.subr.mxu0 0.0
  %2054 = vmatpush1.msra.mxu0 0.0
  %2055 = vmatprep.subr.mxu0 0.0
  %2056 = vmatpush1.msra.mxu0 0.0
  %2057 = vmatprep.subr.mxu0 0.0
  %2058 = vmatpush1.msra.mxu0 0.0
  %2059 = vmatprep.subr.mxu0 0.0
  %2060 = vmatpush1.msra.mxu0 0.0
  %2061 = vmatprep.subr.mxu0 0.0
  %2062 = vmatpush1.msra.mxu0 0.0
  %2063 = vmatprep.mubr.f32.mxu0 0.0
  %2064 = vmatmul.mubr.f32.gmra.mrb[0].mxu0 %v1976
  %v2065 = vpop.f32.mrb[0].mxu0
  %v2066 = vadd.f32 0.0, %v2065
  %v2067 = vpop.f32.mrb[0].mxu0
  %2068 = vmatprep.mubr.f32.mxu0 0.0
  %2069 = vmatmul.mubr.f32.gmra.mrb[0].mxu0 %v1979
  %v2070 = vpop.f32.mrb[0].mxu0
  %v2071 = vadd.f32 0.0, %v2070
  %v2072 = vpop.f32.mrb[0].mxu0
  %2073 = vmatprep.mubr.f32.mxu0 0.0
  %2074 = vmatmul.mubr.f32.gmra.mrb[0].mxu0 %v1982
  %v2075 = vpop.f32.mrb[0].mxu0
  %v2076 = vadd.f32 0.0, %v2075
  %v2077 = vpop.f32.mrb[0].mxu0
  %2078 = vmatprep.mubr.f32.mxu0 0.0
  %2079 = vmatmul.mubr.f32.gmra.mrb[0].mxu0 %v1985
  %v2080 = vpop.f32.mrb[0].mxu0
  %v2081 = vadd.f32 0.0, %v2080
  %v2082 = vpop.f32.mrb[0].mxu0
  %2083 = vmatprep.mubr.f32.mxu0 0.0
  %2084 = vmatmul.mubr.f32.gmra.mrb[0].mxu0 %v1988
  %v2085 = vpop.f32.mrb[0].mxu0
  %v2086 = vadd.f32 0.0, %v2085
  %v2087 = vpop.f32.mrb[0].mxu0
  %2088 = vmatprep.mubr.f32.mxu0 0.0
  %2089 = vmatmul.mubr.f32.gmra.mrb[0].mxu0 %v1991
  %v2090 = vpop.f32.mrb[0].mxu0
  %v2091 = vadd.f32 0.0, %v2090
  %v2092 = vpop.f32.mrb[0].mxu0
  %2093 = vmatprep.mubr.f32.mxu0 0.0
  %2094 = vmatmul.mubr.f32.gmra.mrb[0].mxu0 %v1994
  %v2095 = vpop.f32.mrb[0].mxu0
  %v2096 = vadd.f32 0.0, %v2095
  %v2097 = vpop.f32.mrb[0].mxu0
  %2098 = vmatprep.mubr.f32.mxu0 0.0
  %2099 = vmatmul.mubr.f32.gmra.mrb[0].mxu0 %v1997
  %v2100 = vpop.f32.mrb[0].mxu0
  %v2101 = vadd.f32 0.0, %v2100
  %v2102 = vpop.f32.mrb[0].mxu0
  %2103 = vdwg.mxu0
  %vm2104 = vcmask 15360
  %2105 = vst.msk [vmem:[%s8] sm:$0xff] %vm2104, %v2066
  %2106 = vst.msk [vmem:[%s8 + $0x8] sm:$0xff] %vm2104, %v2071
  %2107 = vst.msk [vmem:[%s8 + $0x10] sm:$0xff] %vm2104, %v2076
  %2108 = vst.msk [vmem:[%s8 + $0x18] sm:$0xff] %vm2104, %v2081
  %2109 = vst.msk [vmem:[%s8 + $0x20] sm:$0xff] %vm2104, %v2086
  %2110 = vst.msk [vmem:[%s8 + $0x28] sm:$0xff] %vm2104, %v2091
  %2111 = vst.msk [vmem:[%s8 + $0x30] sm:$0xff] %vm2104, %v2096
  %2112 = vst.msk [vmem:[%s8 + $0x38] sm:$0xff] %vm2104, %v2101
  // Predicated region
  $region34: #{lstm_small_forward.1} parent=0 // pred_check
    _
  $region35: #{lstm_small_forward.1} parent=0 // pred_check_branch
    %2114 = sbr.rel (0) target = $region37
  $region36: #{lstm_small_forward.1} parent=0 // pred_region
    _
  $region37: #{lstm_small_forward.1} parent=0 // pred_fallthru
    _
  // Predicated region
  $region38: #{lstm_small_forward.1} parent=0 // pred_check
    _
  $region39: #{lstm_small_forward.1} parent=0 // pred_check_branch
    %2116 = sbr.rel (0) target = $region41
  $region40: #{lstm_small_forward.1} parent=0 // pred_region
    _
  $region41: #{lstm_small_forward.1} parent=0 // pred_fallthru
    _

</llo_original>
